<compile_context>
chip_gen: v7x
topology: tpu7x:2x2x1
jax: 0.10.0
libtpu: 0.0.40
codegen_flags: <defaults>
</compile_context>

<pallas_src>
import functools

import jax
import jax.numpy as jnp
from jax.experimental import pallas as pl
from jax.experimental.pallas import tpu as pltpu

EPS = 1e-5


def _round_up(x, m):
    return (x + m - 1) // m * m


# ----------------------------------------------------------------------------
# Fused, tiled matmul kernels:  out = [relu]( x @ w + bias [+ residual] )
# ----------------------------------------------------------------------------
def _mm_kernel(x_ref, w_ref, b_ref, o_ref, acc_ref, *, relu):
    @pl.when(pl.program_id(2) == 0)
    def _init():
        acc_ref[...] = jnp.zeros_like(acc_ref)

    acc_ref[...] += jnp.dot(x_ref[...], w_ref[...],
                            preferred_element_type=jnp.float32)

    @pl.when(pl.program_id(2) == pl.num_programs(2) - 1)
    def _finalize():
        y = acc_ref[...] + b_ref[...]
        if relu:
            y = jnp.maximum(y, 0.0)
        o_ref[...] = y.astype(o_ref.dtype)


def _mm_res_kernel(x_ref, w_ref, b_ref, r_ref, o_ref, acc_ref, *, relu):
    @pl.when(pl.program_id(2) == 0)
    def _init():
        acc_ref[...] = jnp.zeros_like(acc_ref)

    acc_ref[...] += jnp.dot(x_ref[...], w_ref[...],
                            preferred_element_type=jnp.float32)

    @pl.when(pl.program_id(2) == pl.num_programs(2) - 1)
    def _finalize():
        y = acc_ref[...] + b_ref[...] + r_ref[...]
        if relu:
            y = jnp.maximum(y, 0.0)
        o_ref[...] = y.astype(o_ref.dtype)


def matmul_bn(x2d, w2d, bias, residual=None, relu=True):
    """Fused (x2d @ w2d) + bias [+ residual] [-> relu].

    x2d:  [M, K]  activations (cast to bf16 for the MXU)
    w2d:  [K, N]  weights with BN scale pre-folded (cast to bf16)
    bias: [N]     folded BN bias (f32 epilogue)
    residual: optional [M, N] (f32 epilogue)
    Returns f32 [M, N].
    """
    M, K = x2d.shape
    N = w2d.shape[1]

    # ---- tile sizes: lane-dense N / K, sublane-aligned M ----
    tn = min(256, _round_up(N, 128))
    tk = min(512, _round_up(K, 128))
    tm = min(256, _round_up(M, 8))
    Mp = _round_up(M, tm)
    Kp = _round_up(K, tk)
    Np = _round_up(N, tn)

    # ---- pad + cast MXU operands to bf16 (f32 accumulate + f32 epilogue) ----
    xp = jnp.pad(x2d.astype(jnp.float32), ((0, Mp - M), (0, Kp - K))).astype(jnp.bfloat16)
    wp = jnp.pad(w2d.astype(jnp.float32), ((0, Kp - K), (0, Np - N))).astype(jnp.bfloat16)
    bp = jnp.pad(bias.reshape(1, N).astype(jnp.float32), ((0, 0), (0, Np - N)))

    in_specs = [
        pl.BlockSpec((tm, tk), lambda i, j, k: (i, k)),
        pl.BlockSpec((tk, tn), lambda i, j, k: (k, j)),
        pl.BlockSpec((1, tn), lambda i, j, k: (0, j)),
    ]
    args = [xp, wp, bp]
    bytes_accessed = xp.size * 2 + wp.size * 2 + bp.size * 4 + Mp * Np * 4

    if residual is None:
        kernel = functools.partial(_mm_kernel, relu=relu)
    else:
        rp = jnp.pad(residual.astype(jnp.float32), ((0, Mp - M), (0, Np - N)))
        in_specs.append(pl.BlockSpec((tm, tn), lambda i, j, k: (i, j)))
        args.append(rp)
        bytes_accessed += rp.size * 4
        kernel = functools.partial(_mm_res_kernel, relu=relu)

    out = pl.pallas_call(
        kernel,
        out_shape=jax.ShapeDtypeStruct((Mp, Np), jnp.float32),
        grid=(Mp // tm, Np // tn, Kp // tk),
        in_specs=in_specs,
        out_specs=pl.BlockSpec((tm, tn), lambda i, j, k: (i, j)),
        scratch_shapes=[pltpu.VMEM((tm, tn), jnp.float32)],
        compiler_params=pltpu.CompilerParams(
            dimension_semantics=("parallel", "parallel", "arbitrary"),
            vmem_limit_bytes=32 * 1024 * 1024,
        ),
        cost_estimate=pl.CostEstimate(
            flops=2 * Mp * Kp * Np,
            transcendentals=0,
            bytes_accessed=int(bytes_accessed),
        ),
    )(*args)
    return out[:M, :N]


# ----------------------------------------------------------------------------
# Conv-as-matmul glue (im2col in plain JAX, hot path in the Pallas kernel)
# ----------------------------------------------------------------------------
def im2col(x_nhwc, kh, kw, stride, pad):
    if pad > 0:
        x_nhwc = jnp.pad(x_nhwc, ((0, 0), (pad, pad), (pad, pad), (0, 0)))
    N, H, W, C = x_nhwc.shape
    Ho = (H - kh) // stride + 1
    Wo = (W - kw) // stride + 1
    cols = []
    for i in range(kh):
        for j in range(kw):
            cols.append(
                x_nhwc[:, i:i + Ho * stride:stride, j:j + Wo * stride:stride, :]
            )
    return jnp.concatenate(cols, axis=-1)  # [N, Ho, Wo, kh*kw*C]


def conv_bn(x_nhwc, w_oihw, scale, bias, *, stride, pad, relu, residual=None):
    """Conv2d(bias=False) + folded eval-mode BatchNorm (+residual) (+ReLU)."""
    Cout, Cin, kh, kw = w_oihw.shape
    if kh == 1 and kw == 1 and pad == 0:
        patches = x_nhwc[:, ::stride, ::stride, :]          # 1x1 conv: no im2col
    else:
        patches = im2col(x_nhwc, kh, kw, stride, pad)
    N, Ho, Wo, K = patches.shape

    # PyTorch weight [Cout,Cin,kh,kw] -> [kh,kw,Cin,Cout] -> [K,Cout],
    # BN scale folded into the weight columns.
    w2d = jnp.transpose(w_oihw, (2, 3, 1, 0)).reshape(kh * kw * Cin, Cout)
    w2d = w2d * scale.reshape(1, Cout)

    x2d = patches.reshape(N * Ho * Wo, K)
    r2d = None if residual is None else residual.reshape(N * Ho * Wo, Cout)
    y2d = matmul_bn(x2d, w2d, bias, residual=r2d, relu=relu)
    return y2d.reshape(N, Ho, Wo, Cout)


# ----------------------------------------------------------------------------
# Deterministic parameter construction (matches nn.Module shapes, eval-mode BN)
# ----------------------------------------------------------------------------
def make_conv(key, cout, cin, k):
    return (0.05 * jax.random.normal(key, (cout, cin, k, k))).astype(jnp.float32)


def make_bn(key, c):
    k1, k2, k3, k4 = jax.random.split(key, 4)
    gamma = 1.0 + 0.1 * jax.random.normal(k1, (c,))
    beta = 0.1 * jax.random.normal(k2, (c,))
    mean = 0.1 * jax.random.normal(k3, (c,))
    var = jnp.abs(jax.random.normal(k4, (c,))) + 0.5
    scale = (gamma / jnp.sqrt(var + EPS)).astype(jnp.float32)
    bias = (beta - mean * scale).astype(jnp.float32)
    return scale, bias


def make_bottleneck_params(key, in_c, c, stride):
    out_c = c * 4
    keys = jax.random.split(key, 8)
    p = {
        "stride": stride,
        "w1": make_conv(keys[0], c, in_c, 1),
        "bn1": make_bn(keys[1], c),
        "w2": make_conv(keys[2], c, c, 3),
        "bn2": make_bn(keys[3], c),
        "w3": make_conv(keys[4], out_c, c, 1),
        "bn3": make_bn(keys[5], out_c),
    }
    if stride > 1 or in_c != out_c:
        p["sc_w"] = make_conv(keys[6], out_c, in_c, 1)
        p["sc_bn"] = make_bn(keys[7], out_c)
    return p


# ----------------------------------------------------------------------------
# Bottleneck forward (matches the PyTorch module's forward, eval-mode BN)
# ----------------------------------------------------------------------------
def bottleneck_forward(x_nchw, p):
    x = jnp.transpose(x_nchw, (0, 2, 3, 1)).astype(jnp.float32)   # NCHW -> NHWC
    stride = p["stride"]

    if "sc_w" in p:
        shortcut = conv_bn(x, p["sc_w"], *p["sc_bn"],
                           stride=stride, pad=0, relu=False)
    else:
        shortcut = x

    h = conv_bn(x, p["w1"], *p["bn1"], stride=1, pad=0, relu=True)
    h = conv_bn(h, p["w2"], *p["bn2"], stride=stride, pad=1, relu=True)
    # conv3 + bn3 + residual add + relu3: fused in a single kernel call.
    h = conv_bn(h, p["w3"], *p["bn3"], stride=1, pad=0, relu=True,
                residual=shortcut)
    return jnp.transpose(h, (0, 3, 1, 2))                          # NHWC -> NCHW


# ----------------------------------------------------------------------------
if __name__ == "__main__":
    key = jax.random.PRNGKey(0)
    kx, kp = jax.random.split(key)

    in_C, C, stride = 4, 4, 2                 # out_C = 16, shortcut conv active
    x = jax.random.normal(kx, (2, in_C, 16, 16), dtype=jnp.float32)  # NCHW
    params = make_bottleneck_params(kp, in_C, C, stride)

    fwd = jax.jit(lambda inp: bottleneck_forward(inp, params))
    out = jax.block_until_ready(fwd(x))

    assert out.shape == (2, C * 4, 16 // stride, 16 // stride), out.shape
    assert bool(jnp.all(jnp.isfinite(out)))
    print("KERNEL_OK")
</pallas_src>

<mosaic_0001>
module attributes {stable_mosaic.version = 11 : i64} {
  func.func @_mm_kernel(%arg0: i32, %arg1: i32, %arg2: i32, %arg3: memref<256x128xbf16, #tpu.memory_space<vmem>>, %arg4: memref<128x128xbf16, #tpu.memory_space<vmem>>, %arg5: memref<1x128xf32, #tpu.memory_space<vmem>>, %arg6: memref<256x128xf32, #tpu.memory_space<vmem>>, %arg7: memref<256x128xf32, #tpu.memory_space<vmem>>) attributes {dimension_semantics = [#tpu.dimension_semantics<parallel>, #tpu.dimension_semantics<parallel>, #tpu.dimension_semantics<arbitrary>], iteration_bounds = array<i64: 2, 1, 1>, scalar_prefetch = 0 : i64, scratch_operands = 1 : i64, tpu.core_type = #tpu.core_type<tc>, window_params = [{transform_indices = @transform_0, window_bounds = array<i64: 256, 128>}, {transform_indices = @transform_1, window_bounds = array<i64: 128, 128>}, {transform_indices = @transform_2, window_bounds = array<i64: 1, 128>}, {transform_indices = @transform_3, window_bounds = array<i64: 256, 128>}]} {
    %c0_i32 = arith.constant 0 : i32
    %0 = arith.cmpi eq, %arg2, %c0_i32 : i32
    %1 = arith.extui %0 : i1 to i32
    %c0_i32_0 = arith.constant 0 : i32
    %2 = arith.cmpi ne, %1, %c0_i32_0 : i32
    scf.if %2 {
      %cst_10 = arith.constant 0.000000e+00 : f32
      %12 = vector.broadcast %cst_10 : f32 to vector<256x128xf32>
      %c0_11 = arith.constant 0 : index
      %c0_12 = arith.constant 0 : index
      %13 = vector.load %arg7[%c0_11, %c0_12] : memref<256x128xf32, #tpu.memory_space<vmem>>, vector<256x128xf32>
      tpu.vector_store %arg7[%c0_11, %c0_12], %12 {strides = array<i32>} : memref<256x128xf32, #tpu.memory_space<vmem>>, vector<256x128xf32>,
    } else {
    }
    %c0 = arith.constant 0 : index
    %c0_1 = arith.constant 0 : index
    %3 = vector.load %arg7[%c0, %c0_1] : memref<256x128xf32, #tpu.memory_space<vmem>>, vector<256x128xf32>
    %c0_2 = arith.constant 0 : index
    %c0_3 = arith.constant 0 : index
    %4 = vector.load %arg3[%c0_2, %c0_3] : memref<256x128xbf16, #tpu.memory_space<vmem>>, vector<256x128xbf16>
    %c0_4 = arith.constant 0 : index
    %c0_5 = arith.constant 0 : index
    %5 = vector.load %arg4[%c0_4, %c0_5] : memref<128x128xbf16, #tpu.memory_space<vmem>>, vector<128x128xbf16>
    %cst = arith.constant dense<0.000000e+00> : vector<256x128xf32>
    %6 = tpu.matmul %4, %5, %cst {dimension_numbers = #tpu.dot_dimension_numbers<[1], [0], [0], [1], [0, 0, 1, 1], [], []>} : vector<256x128xbf16>, vector<128x128xbf16>, vector<256x128xf32> -> vector<256x128xf32>
    %7 = arith.addf %3, %6 : vector<256x128xf32>
    %c0_6 = arith.constant 0 : index
    %c0_7 = arith.constant 0 : index
    %8 = vector.load %arg7[%c0_6, %c0_7] : memref<256x128xf32, #tpu.memory_space<vmem>>, vector<256x128xf32>
    tpu.vector_store %arg7[%c0_6, %c0_7], %7 {strides = array<i32>} : memref<256x128xf32, #tpu.memory_space<vmem>>, vector<256x128xf32>,
    %c0_i32_8 = arith.constant 0 : i32
    %9 = arith.cmpi eq, %arg2, %c0_i32_8 : i32
    %10 = arith.extui %9 : i1 to i32
    %c0_i32_9 = arith.constant 0 : i32
    %11 = arith.cmpi ne, %10, %c0_i32_9 : i32
    scf.if %11 {
      %c0_10 = arith.constant 0 : index
      %c0_11 = arith.constant 0 : index
      %12 = vector.load %arg7[%c0_10, %c0_11] : memref<256x128xf32, #tpu.memory_space<vmem>>, vector<256x128xf32>
      %c0_12 = arith.constant 0 : index
      %c0_13 = arith.constant 0 : index
      %13 = vector.load %arg5[%c0_12, %c0_13] : memref<1x128xf32, #tpu.memory_space<vmem>>, vector<1x128xf32>
      %14 = vector.broadcast %13 : vector<1x128xf32> to vector<256x128xf32>
      %15 = arith.addf %12, %14 : vector<256x128xf32>
      %cst_14 = arith.constant 0.000000e+00 : f32
      %16 = vector.broadcast %cst_14 : f32 to vector<256x128xf32>
      %17 = arith.maximumf %15, %16 : vector<256x128xf32>
      %c0_15 = arith.constant 0 : index
      %c0_16 = arith.constant 0 : index
      %18 = vector.load %arg6[%c0_15, %c0_16] : memref<256x128xf32, #tpu.memory_space<vmem>>, vector<256x128xf32>
      tpu.vector_store %arg6[%c0_15, %c0_16], %17 {strides = array<i32>} : memref<256x128xf32, #tpu.memory_space<vmem>>, vector<256x128xf32>,
    } else {
    }
    return
  }
  func.func @transform_0(%arg0: i32, %arg1: i32, %arg2: i32) -> (i32, i32) {
    %c0_i32 = arith.constant 0 : i32
    return %arg0, %arg2 : i32, i32
  }
  func.func @transform_1(%arg0: i32, %arg1: i32, %arg2: i32) -> (i32, i32) {
    %c0_i32 = arith.constant 0 : i32
    return %arg2, %arg1 : i32, i32
  }
  func.func @transform_2(%arg0: i32, %arg1: i32, %arg2: i32) -> (i32, i32) {
    %c0_i32 = arith.constant 0 : i32
    %c0_i32_0 = arith.constant 0 : i32
    return %c0_i32, %arg1 : i32, i32
  }
  func.func @transform_3(%arg0: i32, %arg1: i32, %arg2: i32) -> (i32, i32) {
    %c0_i32 = arith.constant 0 : i32
    return %arg0, %arg1 : i32, i32
  }
}

module attributes {stable_mosaic.version = 11 : i64} {
  func.func @_mm_kernel(%arg0: i32, %arg1: i32, %arg2: i32, %arg3: memref<128x128xbf16, #tpu.memory_space<vmem>>, %arg4: memref<128x128xbf16, #tpu.memory_space<vmem>>, %arg5: memref<1x128xf32, #tpu.memory_space<vmem>>, %arg6: memref<128x128xf32, #tpu.memory_space<vmem>>, %arg7: memref<128x128xf32, #tpu.memory_space<vmem>>) attributes {dimension_semantics = [#tpu.dimension_semantics<parallel>, #tpu.dimension_semantics<parallel>, #tpu.dimension_semantics<arbitrary>], iteration_bounds = array<i64: 1, 1, 1>, scalar_prefetch = 0 : i64, scratch_operands = 1 : i64, tpu.core_type = #tpu.core_type<tc>, window_params = [{transform_indices = @transform_0, window_bounds = array<i64: 128, 128>}, {transform_indices = @transform_1, window_bounds = array<i64: 128, 128>}, {transform_indices = @transform_2, window_bounds = array<i64: 1, 128>}, {transform_indices = @transform_3, window_bounds = array<i64: 128, 128>}]} {
    %c0_i32 = arith.constant 0 : i32
    %0 = arith.cmpi eq, %arg2, %c0_i32 : i32
    %1 = arith.extui %0 : i1 to i32
    %c0_i32_0 = arith.constant 0 : i32
    %2 = arith.cmpi ne, %1, %c0_i32_0 : i32
    scf.if %2 {
      %cst_10 = arith.constant 0.000000e+00 : f32
      %12 = vector.broadcast %cst_10 : f32 to vector<128x128xf32>
      %c0_11 = arith.constant 0 : index
      %c0_12 = arith.constant 0 : index
      %13 = vector.load %arg7[%c0_11, %c0_12] : memref<128x128xf32, #tpu.memory_space<vmem>>, vector<128x128xf32>
      tpu.vector_store %arg7[%c0_11, %c0_12], %12 {strides = array<i32>} : memref<128x128xf32, #tpu.memory_space<vmem>>, vector<128x128xf32>,
    } else {
    }
    %c0 = arith.constant 0 : index
    %c0_1 = arith.constant 0 : index
    %3 = vector.load %arg7[%c0, %c0_1] : memref<128x128xf32, #tpu.memory_space<vmem>>, vector<128x128xf32>
    %c0_2 = arith.constant 0 : index
    %c0_3 = arith.constant 0 : index
    %4 = vector.load %arg3[%c0_2, %c0_3] : memref<128x128xbf16, #tpu.memory_space<vmem>>, vector<128x128xbf16>
    %c0_4 = arith.constant 0 : index
    %c0_5 = arith.constant 0 : index
    %5 = vector.load %arg4[%c0_4, %c0_5] : memref<128x128xbf16, #tpu.memory_space<vmem>>, vector<128x128xbf16>
    %cst = arith.constant dense<0.000000e+00> : vector<128x128xf32>
    %6 = tpu.matmul %4, %5, %cst {dimension_numbers = #tpu.dot_dimension_numbers<[1], [0], [0], [1], [0, 0, 1, 1], [], []>} : vector<128x128xbf16>, vector<128x128xbf16>, vector<128x128xf32> -> vector<128x128xf32>
    %7 = arith.addf %3, %6 : vector<128x128xf32>
    %c0_6 = arith.constant 0 : index
    %c0_7 = arith.constant 0 : index
    %8 = vector.load %arg7[%c0_6, %c0_7] : memref<128x128xf32, #tpu.memory_space<vmem>>, vector<128x128xf32>
    tpu.vector_store %arg7[%c0_6, %c0_7], %7 {strides = array<i32>} : memref<128x128xf32, #tpu.memory_space<vmem>>, vector<128x128xf32>,
    %c0_i32_8 = arith.constant 0 : i32
    %9 = arith.cmpi eq, %arg2, %c0_i32_8 : i32
    %10 = arith.extui %9 : i1 to i32
    %c0_i32_9 = arith.constant 0 : i32
    %11 = arith.cmpi ne, %10, %c0_i32_9 : i32
    scf.if %11 {
      %c0_10 = arith.constant 0 : index
      %c0_11 = arith.constant 0 : index
      %12 = vector.load %arg7[%c0_10, %c0_11] : memref<128x128xf32, #tpu.memory_space<vmem>>, vector<128x128xf32>
      %c0_12 = arith.constant 0 : index
      %c0_13 = arith.constant 0 : index
      %13 = vector.load %arg5[%c0_12, %c0_13] : memref<1x128xf32, #tpu.memory_space<vmem>>, vector<1x128xf32>
      %14 = vector.broadcast %13 : vector<1x128xf32> to vector<128x128xf32>
      %15 = arith.addf %12, %14 : vector<128x128xf32>
      %cst_14 = arith.constant 0.000000e+00 : f32
      %16 = vector.broadcast %cst_14 : f32 to vector<128x128xf32>
      %17 = arith.maximumf %15, %16 : vector<128x128xf32>
      %c0_15 = arith.constant 0 : index
      %c0_16 = arith.constant 0 : index
      %18 = vector.load %arg6[%c0_15, %c0_16] : memref<128x128xf32, #tpu.memory_space<vmem>>, vector<128x128xf32>
      tpu.vector_store %arg6[%c0_15, %c0_16], %17 {strides = array<i32>} : memref<128x128xf32, #tpu.memory_space<vmem>>, vector<128x128xf32>,
    } else {
    }
    return
  }
  func.func @transform_0(%arg0: i32, %arg1: i32, %arg2: i32) -> (i32, i32) {
    %c0_i32 = arith.constant 0 : i32
    return %arg0, %arg2 : i32, i32
  }
  func.func @transform_1(%arg0: i32, %arg1: i32, %arg2: i32) -> (i32, i32) {
    %c0_i32 = arith.constant 0 : i32
    return %arg2, %arg1 : i32, i32
  }
  func.func @transform_2(%arg0: i32, %arg1: i32, %arg2: i32) -> (i32, i32) {
    %c0_i32 = arith.constant 0 : i32
    %c0_i32_0 = arith.constant 0 : i32
    return %c0_i32, %arg1 : i32, i32
  }
  func.func @transform_3(%arg0: i32, %arg1: i32, %arg2: i32) -> (i32, i32) {
    %c0_i32 = arith.constant 0 : i32
    return %arg0, %arg1 : i32, i32
  }
}

module attributes {stable_mosaic.version = 11 : i64} {
  func.func @_mm_res_kernel(%arg0: i32, %arg1: i32, %arg2: i32, %arg3: memref<128x128xbf16, #tpu.memory_space<vmem>>, %arg4: memref<128x128xbf16, #tpu.memory_space<vmem>>, %arg5: memref<1x128xf32, #tpu.memory_space<vmem>>, %arg6: memref<128x128xf32, #tpu.memory_space<vmem>>, %arg7: memref<128x128xf32, #tpu.memory_space<vmem>>, %arg8: memref<128x128xf32, #tpu.memory_space<vmem>>) attributes {dimension_semantics = [#tpu.dimension_semantics<parallel>, #tpu.dimension_semantics<parallel>, #tpu.dimension_semantics<arbitrary>], iteration_bounds = array<i64: 1, 1, 1>, scalar_prefetch = 0 : i64, scratch_operands = 1 : i64, tpu.core_type = #tpu.core_type<tc>, window_params = [{transform_indices = @transform_0, window_bounds = array<i64: 128, 128>}, {transform_indices = @transform_1, window_bounds = array<i64: 128, 128>}, {transform_indices = @transform_2, window_bounds = array<i64: 1, 128>}, {transform_indices = @transform_3, window_bounds = array<i64: 128, 128>}, {transform_indices = @transform_4, window_bounds = array<i64: 128, 128>}]} {
    %c0_i32 = arith.constant 0 : i32
    %0 = arith.cmpi eq, %arg2, %c0_i32 : i32
    %1 = arith.extui %0 : i1 to i32
    %c0_i32_0 = arith.constant 0 : i32
    %2 = arith.cmpi ne, %1, %c0_i32_0 : i32
    scf.if %2 {
      %cst_10 = arith.constant 0.000000e+00 : f32
      %12 = vector.broadcast %cst_10 : f32 to vector<128x128xf32>
      %c0_11 = arith.constant 0 : index
      %c0_12 = arith.constant 0 : index
      %13 = vector.load %arg8[%c0_11, %c0_12] : memref<128x128xf32, #tpu.memory_space<vmem>>, vector<128x128xf32>
      tpu.vector_store %arg8[%c0_11, %c0_12], %12 {strides = array<i32>} : memref<128x128xf32, #tpu.memory_space<vmem>>, vector<128x128xf32>,
    } else {
    }
    %c0 = arith.constant 0 : index
    %c0_1 = arith.constant 0 : index
    %3 = vector.load %arg8[%c0, %c0_1] : memref<128x128xf32, #tpu.memory_space<vmem>>, vector<128x128xf32>
    %c0_2 = arith.constant 0 : index
    %c0_3 = arith.constant 0 : index
    %4 = vector.load %arg3[%c0_2, %c0_3] : memref<128x128xbf16, #tpu.memory_space<vmem>>, vector<128x128xbf16>
    %c0_4 = arith.constant 0 : index
    %c0_5 = arith.constant 0 : index
    %5 = vector.load %arg4[%c0_4, %c0_5] : memref<128x128xbf16, #tpu.memory_space<vmem>>, vector<128x128xbf16>
    %cst = arith.constant dense<0.000000e+00> : vector<128x128xf32>
    %6 = tpu.matmul %4, %5, %cst {dimension_numbers = #tpu.dot_dimension_numbers<[1], [0], [0], [1], [0, 0, 1, 1], [], []>} : vector<128x128xbf16>, vector<128x128xbf16>, vector<128x128xf32> -> vector<128x128xf32>
    %7 = arith.addf %3, %6 : vector<128x128xf32>
    %c0_6 = arith.constant 0 : index
    %c0_7 = arith.constant 0 : index
    %8 = vector.load %arg8[%c0_6, %c0_7] : memref<128x128xf32, #tpu.memory_space<vmem>>, vector<128x128xf32>
    tpu.vector_store %arg8[%c0_6, %c0_7], %7 {strides = array<i32>} : memref<128x128xf32, #tpu.memory_space<vmem>>, vector<128x128xf32>,
    %c0_i32_8 = arith.constant 0 : i32
    %9 = arith.cmpi eq, %arg2, %c0_i32_8 : i32
    %10 = arith.extui %9 : i1 to i32
    %c0_i32_9 = arith.constant 0 : i32
    %11 = arith.cmpi ne, %10, %c0_i32_9 : i32
    scf.if %11 {
      %c0_10 = arith.constant 0 : index
      %c0_11 = arith.constant 0 : index
      %12 = vector.load %arg8[%c0_10, %c0_11] : memref<128x128xf32, #tpu.memory_space<vmem>>, vector<128x128xf32>
      %c0_12 = arith.constant 0 : index
      %c0_13 = arith.constant 0 : index
      %13 = vector.load %arg5[%c0_12, %c0_13] : memref<1x128xf32, #tpu.memory_space<vmem>>, vector<1x128xf32>
      %14 = vector.broadcast %13 : vector<1x128xf32> to vector<128x128xf32>
      %15 = arith.addf %12, %14 : vector<128x128xf32>
      %c0_14 = arith.constant 0 : index
      %c0_15 = arith.constant 0 : index
      %16 = vector.load %arg6[%c0_14, %c0_15] : memref<128x128xf32, #tpu.memory_space<vmem>>, vector<128x128xf32>
      %17 = arith.addf %15, %16 : vector<128x128xf32>
      %cst_16 = arith.constant 0.000000e+00 : f32
      %18 = vector.broadcast %cst_16 : f32 to vector<128x128xf32>
      %19 = arith.maximumf %17, %18 : vector<128x128xf32>
      %c0_17 = arith.constant 0 : index
      %c0_18 = arith.constant 0 : index
      %20 = vector.load %arg7[%c0_17, %c0_18] : memref<128x128xf32, #tpu.memory_space<vmem>>, vector<128x128xf32>
      tpu.vector_store %arg7[%c0_17, %c0_18], %19 {strides = array<i32>} : memref<128x128xf32, #tpu.memory_space<vmem>>, vector<128x128xf32>,
    } else {
    }
    return
  }
  func.func @transform_0(%arg0: i32, %arg1: i32, %arg2: i32) -> (i32, i32) {
    %c0_i32 = arith.constant 0 : i32
    return %arg0, %arg2 : i32, i32
  }
  func.func @transform_1(%arg0: i32, %arg1: i32, %arg2: i32) -> (i32, i32) {
    %c0_i32 = arith.constant 0 : i32
    return %arg2, %arg1 : i32, i32
  }
  func.func @transform_2(%arg0: i32, %arg1: i32, %arg2: i32) -> (i32, i32) {
    %c0_i32 = arith.constant 0 : i32
    %c0_i32_0 = arith.constant 0 : i32
    return %c0_i32, %arg1 : i32, i32
  }
  func.func @transform_3(%arg0: i32, %arg1: i32, %arg2: i32) -> (i32, i32) {
    %c0_i32 = arith.constant 0 : i32
    return %arg0, %arg1 : i32, i32
  }
  func.func @transform_4(%arg0: i32, %arg1: i32, %arg2: i32) -> (i32, i32) {
    %c0_i32 = arith.constant 0 : i32
    return %arg0, %arg1 : i32, i32
  }
}

module attributes {stable_mosaic.version = 11 : i64} {
  func.func @_mm_kernel(%arg0: i32, %arg1: i32, %arg2: i32, %arg3: memref<128x128xbf16, #tpu.memory_space<vmem>>, %arg4: memref<128x128xbf16, #tpu.memory_space<vmem>>, %arg5: memref<1x128xf32, #tpu.memory_space<vmem>>, %arg6: memref<128x128xf32, #tpu.memory_space<vmem>>, %arg7: memref<128x128xf32, #tpu.memory_space<vmem>>) attributes {dimension_semantics = [#tpu.dimension_semantics<parallel>, #tpu.dimension_semantics<parallel>, #tpu.dimension_semantics<arbitrary>], iteration_bounds = array<i64: 1, 1, 1>, scalar_prefetch = 0 : i64, scratch_operands = 1 : i64, tpu.core_type = #tpu.core_type<tc>, window_params = [{transform_indices = @transform_0, window_bounds = array<i64: 128, 128>}, {transform_indices = @transform_1, window_bounds = array<i64: 128, 128>}, {transform_indices = @transform_2, window_bounds = array<i64: 1, 128>}, {transform_indices = @transform_3, window_bounds = array<i64: 128, 128>}]} {
    %c0_i32 = arith.constant 0 : i32
    %0 = arith.cmpi eq, %arg2, %c0_i32 : i32
    %1 = arith.extui %0 : i1 to i32
    %c0_i32_0 = arith.constant 0 : i32
    %2 = arith.cmpi ne, %1, %c0_i32_0 : i32
    scf.if %2 {
      %cst_10 = arith.constant 0.000000e+00 : f32
      %12 = vector.broadcast %cst_10 : f32 to vector<128x128xf32>
      %c0_11 = arith.constant 0 : index
      %c0_12 = arith.constant 0 : index
      %13 = vector.load %arg7[%c0_11, %c0_12] : memref<128x128xf32, #tpu.memory_space<vmem>>, vector<128x128xf32>
      tpu.vector_store %arg7[%c0_11, %c0_12], %12 {strides = array<i32>} : memref<128x128xf32, #tpu.memory_space<vmem>>, vector<128x128xf32>,
    } else {
    }
    %c0 = arith.constant 0 : index
    %c0_1 = arith.constant 0 : index
    %3 = vector.load %arg7[%c0, %c0_1] : memref<128x128xf32, #tpu.memory_space<vmem>>, vector<128x128xf32>
    %c0_2 = arith.constant 0 : index
    %c0_3 = arith.constant 0 : index
    %4 = vector.load %arg3[%c0_2, %c0_3] : memref<128x128xbf16, #tpu.memory_space<vmem>>, vector<128x128xbf16>
    %c0_4 = arith.constant 0 : index
    %c0_5 = arith.constant 0 : index
    %5 = vector.load %arg4[%c0_4, %c0_5] : memref<128x128xbf16, #tpu.memory_space<vmem>>, vector<128x128xbf16>
    %cst = arith.constant dense<0.000000e+00> : vector<128x128xf32>
    %6 = tpu.matmul %4, %5, %cst {dimension_numbers = #tpu.dot_dimension_numbers<[1], [0], [0], [1], [0, 0, 1, 1], [], []>} : vector<128x128xbf16>, vector<128x128xbf16>, vector<128x128xf32> -> vector<128x128xf32>
    %7 = arith.addf %3, %6 : vector<128x128xf32>
    %c0_6 = arith.constant 0 : index
    %c0_7 = arith.constant 0 : index
    %8 = vector.load %arg7[%c0_6, %c0_7] : memref<128x128xf32, #tpu.memory_space<vmem>>, vector<128x128xf32>
    tpu.vector_store %arg7[%c0_6, %c0_7], %7 {strides = array<i32>} : memref<128x128xf32, #tpu.memory_space<vmem>>, vector<128x128xf32>,
    %c0_i32_8 = arith.constant 0 : i32
    %9 = arith.cmpi eq, %arg2, %c0_i32_8 : i32
    %10 = arith.extui %9 : i1 to i32
    %c0_i32_9 = arith.constant 0 : i32
    %11 = arith.cmpi ne, %10, %c0_i32_9 : i32
    scf.if %11 {
      %c0_10 = arith.constant 0 : index
      %c0_11 = arith.constant 0 : index
      %12 = vector.load %arg7[%c0_10, %c0_11] : memref<128x128xf32, #tpu.memory_space<vmem>>, vector<128x128xf32>
      %c0_12 = arith.constant 0 : index
      %c0_13 = arith.constant 0 : index
      %13 = vector.load %arg5[%c0_12, %c0_13] : memref<1x128xf32, #tpu.memory_space<vmem>>, vector<1x128xf32>
      %14 = vector.broadcast %13 : vector<1x128xf32> to vector<128x128xf32>
      %15 = arith.addf %12, %14 : vector<128x128xf32>
      %c0_14 = arith.constant 0 : index
      %c0_15 = arith.constant 0 : index
      %16 = vector.load %arg6[%c0_14, %c0_15] : memref<128x128xf32, #tpu.memory_space<vmem>>, vector<128x128xf32>
      tpu.vector_store %arg6[%c0_14, %c0_15], %15 {strides = array<i32>} : memref<128x128xf32, #tpu.memory_space<vmem>>, vector<128x128xf32>,
    } else {
    }
    return
  }
  func.func @transform_0(%arg0: i32, %arg1: i32, %arg2: i32) -> (i32, i32) {
    %c0_i32 = arith.constant 0 : i32
    return %arg0, %arg2 : i32, i32
  }
  func.func @transform_1(%arg0: i32, %arg1: i32, %arg2: i32) -> (i32, i32) {
    %c0_i32 = arith.constant 0 : i32
    return %arg2, %arg1 : i32, i32
  }
  func.func @transform_2(%arg0: i32, %arg1: i32, %arg2: i32) -> (i32, i32) {
    %c0_i32 = arith.constant 0 : i32
    %c0_i32_0 = arith.constant 0 : i32
    return %c0_i32, %arg1 : i32, i32
  }
  func.func @transform_3(%arg0: i32, %arg1: i32, %arg2: i32) -> (i32, i32) {
    %c0_i32 = arith.constant 0 : i32
    return %arg0, %arg1 : i32, i32
  }
}

</mosaic_0001>

<llo_original>
// kernel: _lambda_.5
$region0: #{_lambda_.5}
  #allocation0 [shape = 'u32[]', space=smem, size = 0x4, offset = 0x4, fixed_abs, tag = 'smem constant byte address 0x4 - core index']
  #allocation1 [shape = 'u32[144,128]{1,0:T(1,128)}', space=vmem, size = 0x12000, scoped, tag = 'internal scratch']
  #allocation2 [shape = 'f32[256,128]{1,0:T(8,128)}', space=vmem, size = 0x20000, scoped, tag = 'scratch operand']
  %s0 = inlined_call_operand.vmem [shape: bf16[512,128], index: 0, kind: input, shape index: {}]
  %s1 = inlined_call_operand.vmem [shape: bf16[128,128], index: 1, kind: input, shape index: {}]
  %s2 = inlined_call_operand.vmem [shape: f32[1,128], index: 2, kind: input, shape index: {}]
  %s3 = inlined_call_operand.vmem [shape: f32[512,128], index: 3, kind: output, shape index: {}]
  %s4 = sld [smem:[#allocation0]]
  $region53: #{_lambda_.5} parent=0
    _
  %s6 = ssub.s32 1, %s4
  %s7 = scalar_select 0, %s6, %s4
  loop: start=0, step=1, limit=4
  $region2: #{_lambda_.5} parent=0 // loop_pre_header
    _
  $region3: #{_lambda_.5} parent=0 // loop_header
    %s9 = sphi 0, %s13
    %p10 = scmp.ge.s32.totalorder %s9, 4
    %s16 = sphi 0, %s35
    %s17 = sphi 0, %s31
    %s18 = sphi 0, %s27
    %s19 = sphi 0, %s16
    %s20 = sphi 0, %s17
    %s21 = sphi 0, %s18
    %s22 = sphi 0, %s19
    %s23 = sphi 0, %s20
    %s24 = sphi 0, %s21
    %s40 = sphi 0, %s42
    %s43 = sphi 0, %s40
    %s44 = sphi 0, %s43
    %s60 = sphi 0, %s44
    %s68 = sphi 0, %s70
    %s71 = sphi 0, %s68
    %s72 = sphi 0, %s71
    %s88 = sphi 0, %s72
    %s94 = sphi 0, %s96
    %s97 = sphi 0, %s94
    %s98 = sphi 0, %s97
    %s114 = sphi 0, %s98
    %s122 = sphi 0, %s124
    %s125 = sphi 0, %s122
    %s126 = sphi 0, %s125
    %s142 = sphi 0, %s126
  $region4: #{_lambda_.5} parent=0 // loop_header_branch
    %12 = sbr.rel (%p10) target = $region8
  $region5: #{_lambda_.5} parent=0 // loop_body
    %s14 = ssub.s32 %s9, 1
    %s15 = ssub.s32 %s9, 2
    %s25 = sadd.s32 1, %s18
    %p26 = scmp.ge.s32.totalorder %s25, 1
    %s27 = scalar_select %p26, 0, %s25
    %s28 = sadd.s32 1, %s17
    %s29 = scalar_select %p26, %s28, %s17
    %p30 = scmp.ge.s32.totalorder %s29, 1
    %s31 = scalar_select %p30, 0, %s29
    %s32 = sadd.s32 1, %s16
    %s33 = scalar_select %p30, %s32, %s16
    %p34 = scmp.ge.s32.totalorder %s33, 2
    %s35 = scalar_select %p34, 0, %s33
    %s36 = ssub.s32 %s16, %s35
    %s37 = ssub.s32 %s18, %s27
    %s38 = sor.u32 %s36, %s37
    %p39 = scmp.eq.s32.totalorder %s38, 0
    %s41 = sadd.s32 %s40, 1
    %s42 = scalar_select %p39, %s40, %s41
    %p45 = pneg %p39
    %p46 = scmp.eq.s32.totalorder %s9, 1
    %p47 = por %p45, %p46
    %p48 = scmp.ne.s32.totalorder %s40, %s43
    %p49 = scmp.eq.s32.totalorder %s9, 0
    %p50 = por %p48, %p49
    %p51 = scmp.ne.s32.totalorder %s40, %s43
    %p52 = scmp.eq.s32.totalorder %s14, 1
    %p53 = por %p51, %p52
    %p54 = scmp.ne.s32.totalorder %s43, %s44
    %p55 = scmp.eq.s32.totalorder %s14, 0
    %p56 = por %p54, %p55
    %p57 = scmp.ne.s32.totalorder %s43, %s44
    %p58 = scmp.eq.s32.totalorder %s15, 1
    %p59 = por %p57, %p58
    %p61 = scmp.ne.s32.totalorder %s44, %s60
    %p62 = scmp.eq.s32.totalorder %s15, 0
    %p63 = por %p61, %p62
    %s64 = ssub.s32 %s18, %s27
    %s65 = ssub.s32 %s17, %s31
    %s66 = sor.u32 %s64, %s65
    %p67 = scmp.eq.s32.totalorder %s66, 0
    %s69 = sadd.s32 %s68, 1
    %s70 = scalar_select %p67, %s68, %s69
    %p73 = pneg %p67
    %p74 = scmp.eq.s32.totalorder %s9, 1
    %p75 = por %p73, %p74
    %p76 = scmp.ne.s32.totalorder %s68, %s71
    %p77 = scmp.eq.s32.totalorder %s9, 0
    %p78 = por %p76, %p77
    %p79 = scmp.ne.s32.totalorder %s68, %s71
    %p80 = scmp.eq.s32.totalorder %s14, 1
    %p81 = por %p79, %p80
    %p82 = scmp.ne.s32.totalorder %s71, %s72
    %p83 = scmp.eq.s32.totalorder %s14, 0
    %p84 = por %p82, %p83
    %p85 = scmp.ne.s32.totalorder %s71, %s72
    %p86 = scmp.eq.s32.totalorder %s15, 1
    %p87 = por %p85, %p86
    %p89 = scmp.ne.s32.totalorder %s72, %s88
    %p90 = scmp.eq.s32.totalorder %s15, 0
    %p91 = por %p89, %p90
    %s92 = ssub.s32 %s17, %s31
    %p93 = scmp.eq.s32.totalorder %s92, 0
    %s95 = sadd.s32 %s94, 1
    %s96 = scalar_select %p93, %s94, %s95
    %p99 = pneg %p93
    %p100 = scmp.eq.s32.totalorder %s9, 1
    %p101 = por %p99, %p100
    %p102 = scmp.ne.s32.totalorder %s94, %s97
    %p103 = scmp.eq.s32.totalorder %s9, 0
    %p104 = por %p102, %p103
    %p105 = scmp.ne.s32.totalorder %s94, %s97
    %p106 = scmp.eq.s32.totalorder %s14, 1
    %p107 = por %p105, %p106
    %p108 = scmp.ne.s32.totalorder %s97, %s98
    %p109 = scmp.eq.s32.totalorder %s14, 0
    %p110 = por %p108, %p109
    %p111 = scmp.ne.s32.totalorder %s97, %s98
    %p112 = scmp.eq.s32.totalorder %s15, 1
    %p113 = por %p111, %p112
    %p115 = scmp.ne.s32.totalorder %s98, %s114
    %p116 = scmp.eq.s32.totalorder %s15, 0
    %p117 = por %p115, %p116
    %s118 = ssub.s32 %s16, %s35
    %s119 = ssub.s32 %s17, %s31
    %s120 = sor.u32 %s118, %s119
    %p121 = scmp.eq.s32.totalorder %s120, 0
    %s123 = sadd.s32 %s122, 1
    %s124 = scalar_select %p121, %s122, %s123
    %p127 = pneg %p121
    %p128 = scmp.eq.s32.totalorder %s9, 1
    %p129 = por %p127, %p128
    %p130 = scmp.ne.s32.totalorder %s122, %s125
    %p131 = scmp.eq.s32.totalorder %s9, 0
    %p132 = por %p130, %p131
    %p133 = scmp.ne.s32.totalorder %s122, %s125
    %p134 = scmp.eq.s32.totalorder %s14, 1
    %p135 = por %p133, %p134
    %p136 = scmp.ne.s32.totalorder %s125, %s126
    %p137 = scmp.eq.s32.totalorder %s14, 0
    %p138 = por %p136, %p137
    %p139 = scmp.ne.s32.totalorder %s125, %s126
    %p140 = scmp.eq.s32.totalorder %s15, 1
    %p141 = por %p139, %p140
    %p143 = scmp.ne.s32.totalorder %s126, %s142
    %p144 = scmp.eq.s32.totalorder %s15, 0
    %p145 = por %p143, %p144
    %p146 = scmp.le.s32.totalorder 1, %s9
    %p147 = scmp.lt.s32.totalorder %s9, 3
    %p148 = pnand %p146, %p147
    %p149 = pneg %p148
    // Predicated region
    $region9: #{_lambda_.5} parent=5 // pred_check
      _
    $region10: #{_lambda_.5} parent=5 // pred_check_branch
      %151 = sbr.rel (%p148) target = $region12
    $region11: #{_lambda_.5} parent=5 // pred_region
      %s152 = ssub.s32 %s9, 1
      // Predicated region
      $region13: #{_lambda_.5} parent=11 // pred_check
        %p153 = pneg %p84
      $region14: #{_lambda_.5} parent=11 // pred_check_branch
        %155 = sbr.rel (%p153) target = $region16
      $region15: #{_lambda_.5} parent=11 // pred_region
        %s156 = smul.u32 16, %s21
        %p157 = scmp.lt.s32.totalorder %s156, 15
        %s158 = scalar_select %p157, %s156, 15
        %p159 = scmp.lt.s32.totalorder %s20, 0
        %s160 = scalar_select %p159, %s20, 0
        %s161 = sadd.s32 %s160, %s158
        %s162 = smul.addr %s161, 4
        %s163 = scalar_lea.vmem %s1, %s162
        %s164 = smul.u32 16, %s21
      $region16: #{_lambda_.5} parent=11 // pred_fallthru
        _
      // Predicated region
      $region17: #{_lambda_.5} parent=11 // pred_check
        %p165 = pneg %p110
      $region18: #{_lambda_.5} parent=11 // pred_check_branch
        %167 = sbr.rel (%p165) target = $region20
      $region19: #{_lambda_.5} parent=11 // pred_region
        %p168 = scmp.lt.s32.totalorder %s20, 0
        %s169 = scalar_select %p168, %s20, 0
        %s170 = scalar_lea.vmem %s2, %s169
      $region20: #{_lambda_.5} parent=11 // pred_fallthru
        _
    $region12: #{_lambda_.5} parent=5 // pred_fallthru
      _
    %p171 = scmp.lt.s32.totalorder %s9, 2
    // Predicated region
    $region21: #{_lambda_.5} parent=5 // pred_check
      %p172 = pneg %p171
    $region22: #{_lambda_.5} parent=5 // pred_check_branch
      %174 = sbr.rel (%p172) target = $region24
    $region23: #{_lambda_.5} parent=5 // pred_region
      // Predicated region
      $region25: #{_lambda_.5} parent=23 // pred_check
        %p175 = pneg %p50
      $region26: #{_lambda_.5} parent=23 // pred_check_branch
        %177 = sbr.rel (%p175) target = $region28
      $region27: #{_lambda_.5} parent=23 // pred_region
        %s178 = smul.u32 32, %s16
        %p179 = scmp.lt.s32.totalorder %s178, 63
        %s180 = scalar_select %p179, %s178, 63
        %p181 = scmp.lt.s32.totalorder %s18, 0
        %s182 = scalar_select %p181, %s18, 0
        %s183 = sadd.s32 %s182, %s180
        %s184 = smul.addr %s183, 4
        %s185 = scalar_lea.vmem %s0, %s184
        %s186 = smul.u32 32, %s16
      $region28: #{_lambda_.5} parent=23 // pred_fallthru
        _
    $region24: #{_lambda_.5} parent=5 // pred_fallthru
      _
    %p187 = scmp.le.s32.totalorder 1, %s9
    %p188 = scmp.lt.s32.totalorder %s9, 3
    %p189 = pnand %p187, %p188
    %p190 = pneg %p189
    // Predicated region
    $region29: #{_lambda_.5} parent=5 // pred_check
      _
    $region30: #{_lambda_.5} parent=5 // pred_check_branch
      %192 = sbr.rel (%p189) target = $region32
    $region31: #{_lambda_.5} parent=5 // pred_region
      %s193 = ssub.s32 %s9, 1
      %s194 = smul.u32 32, %s19
      %p195 = scmp.lt.s32.totalorder %s194, 63
      %s196 = scalar_select %p195, %s194, 63
      %p197 = scmp.lt.s32.totalorder %s21, 0
      %s198 = scalar_select %p197, %s21, 0
      %s199 = sadd.s32 %s198, %s196
      %s200 = smul.addr %s199, 4
      %s201 = scalar_lea.vmem %s0, %s200
      %p202 = pneg %p56
      %p203 = pneg %p53
      %s204 = smul.u32 16, %s21
      %p205 = scmp.lt.s32.totalorder %s204, 15
      %s206 = scalar_select %p205, %s204, 15
      %p207 = scmp.lt.s32.totalorder %s20, 0
      %s208 = scalar_select %p207, %s20, 0
      %s209 = sadd.s32 %s208, %s206
      %s210 = smul.addr %s209, 4
      %s211 = scalar_lea.vmem %s1, %s210
      %p212 = pneg %p84
      %p213 = pneg %p81
      %p214 = scmp.lt.s32.totalorder %s20, 0
      %s215 = scalar_select %p214, %s20, 0
      %s216 = scalar_lea.vmem %s2, %s215
      %p217 = pneg %p110
      %p218 = pneg %p107
      %p219 = pneg %p138
      %p220 = pneg %p135
      %s221 = smul.u32 32, %s19
      %p222 = scmp.lt.s32.totalorder %s221, 63
      %s223 = scalar_select %p222, %s221, 63
      %p224 = scmp.lt.s32.totalorder %s20, 0
      %s225 = scalar_select %p224, %s20, 0
      %s226 = sadd.s32 %s225, %s223
      %s227 = smul.addr %s226, 8
      %s228 = scalar_lea.vmem %s3, %s227
      %s229 = smul.u32 32, %s19
      %p230 = scmp.lt.s32.totalorder %s229, 63
      %s231 = scalar_select %p230, %s229, 63
      %p232 = scmp.lt.s32.totalorder %s21, 0
      %s233 = scalar_select %p232, %s21, 0
      %s234 = sadd.s32 %s233, %s231
      %s235 = smul.addr %s234, 4
      %s236 = scalar_lea.vmem %s0, %s235
      %s237 = smul.u32 32, %s19
      %s238 = smul.u32 16, %s21
      %p239 = scmp.lt.s32.totalorder %s238, 15
      %s240 = scalar_select %p239, %s238, 15
      %p241 = scmp.lt.s32.totalorder %s20, 0
      %s242 = scalar_select %p241, %s20, 0
      %s243 = sadd.s32 %s242, %s240
      %s244 = smul.addr %s243, 4
      %s245 = scalar_lea.vmem %s1, %s244
      %s246 = smul.u32 16, %s21
      %p247 = scmp.lt.s32.totalorder %s20, 0
      %s248 = scalar_select %p247, %s20, 0
      %s249 = scalar_lea.vmem %s2, %s248
      %s250 = smul.u32 32, %s19
      %p251 = scmp.lt.s32.totalorder %s250, 63
      %s252 = scalar_select %p251, %s250, 63
      %p253 = scmp.lt.s32.totalorder %s20, 0
      %s254 = scalar_select %p253, %s20, 0
      %s255 = sadd.s32 %s254, %s252
      %s256 = smul.addr %s255, 8
      %s257 = scalar_lea.vmem %s3, %s256
      %s258 = smul.u32 32, %s19
      %p260 = scmp.eq.s32.totalorder %s21, 0
      // Predicated region
      $region33: #{_lambda_.5} parent=31 // pred_check
        %p261 = pneg %p260
      $region34: #{_lambda_.5} parent=31 // pred_check_branch
        %263 = sbr.rel (%p261) target = $region36
      $region35: #{_lambda_.5} parent=31 // pred_region
        %264 = vst [vmem:[#allocation2] sm:$0xff] 0.0
        %265 = vst [vmem:[#allocation2 + $0x8] sm:$0xff] 0.0
        %266 = vst [vmem:[#allocation2 + $0x10] sm:$0xff] 0.0
        %267 = vst [vmem:[#allocation2 + $0x18] sm:$0xff] 0.0
        %268 = vst [vmem:[#allocation2 + $0x20] sm:$0xff] 0.0
        %269 = vst [vmem:[#allocation2 + $0x28] sm:$0xff] 0.0
        %270 = vst [vmem:[#allocation2 + $0x30] sm:$0xff] 0.0
        %271 = vst [vmem:[#allocation2 + $0x38] sm:$0xff] 0.0
        %272 = vst [vmem:[#allocation2 + $0x40] sm:$0xff] 0.0
        %273 = vst [vmem:[#allocation2 + $0x48] sm:$0xff] 0.0
        %274 = vst [vmem:[#allocation2 + $0x50] sm:$0xff] 0.0
        %275 = vst [vmem:[#allocation2 + $0x58] sm:$0xff] 0.0
        %276 = vst [vmem:[#allocation2 + $0x60] sm:$0xff] 0.0
        %277 = vst [vmem:[#allocation2 + $0x68] sm:$0xff] 0.0
        %278 = vst [vmem:[#allocation2 + $0x70] sm:$0xff] 0.0
        %279 = vst [vmem:[#allocation2 + $0x78] sm:$0xff] 0.0
        %280 = vst [vmem:[#allocation2 + $0x80] sm:$0xff] 0.0
        %281 = vst [vmem:[#allocation2 + $0x88] sm:$0xff] 0.0
        %282 = vst [vmem:[#allocation2 + $0x90] sm:$0xff] 0.0
        %283 = vst [vmem:[#allocation2 + $0x98] sm:$0xff] 0.0
        %284 = vst [vmem:[#allocation2 + $0xa0] sm:$0xff] 0.0
        %285 = vst [vmem:[#allocation2 + $0xa8] sm:$0xff] 0.0
        %286 = vst [vmem:[#allocation2 + $0xb0] sm:$0xff] 0.0
        %287 = vst [vmem:[#allocation2 + $0xb8] sm:$0xff] 0.0
        %288 = vst [vmem:[#allocation2 + $0xc0] sm:$0xff] 0.0
        %289 = vst [vmem:[#allocation2 + $0xc8] sm:$0xff] 0.0
        %290 = vst [vmem:[#allocation2 + $0xd0] sm:$0xff] 0.0
        %291 = vst [vmem:[#allocation2 + $0xd8] sm:$0xff] 0.0
        %292 = vst [vmem:[#allocation2 + $0xe0] sm:$0xff] 0.0
        %293 = vst [vmem:[#allocation2 + $0xe8] sm:$0xff] 0.0
        %294 = vst [vmem:[#allocation2 + $0xf0] sm:$0xff] 0.0
        %295 = vst [vmem:[#allocation2 + $0xf8] sm:$0xff] 0.0
      $region36: #{_lambda_.5} parent=31 // pred_fallthru
        _
      %v296 = vld [vmem:[#allocation2] sm:$0xff]
      %v297 = vld [vmem:[#allocation2 + $0x8] sm:$0xff]
      %v298 = vld [vmem:[#allocation2 + $0x10] sm:$0xff]
      %v299 = vld [vmem:[#allocation2 + $0x18] sm:$0xff]
      %v300 = vld [vmem:[#allocation2 + $0x20] sm:$0xff]
      %v301 = vld [vmem:[#allocation2 + $0x28] sm:$0xff]
      %v302 = vld [vmem:[#allocation2 + $0x30] sm:$0xff]
      %v303 = vld [vmem:[#allocation2 + $0x38] sm:$0xff]
      %v304 = vld [vmem:[#allocation2 + $0x40] sm:$0xff]
      %v305 = vld [vmem:[#allocation2 + $0x48] sm:$0xff]
      %v306 = vld [vmem:[#allocation2 + $0x50] sm:$0xff]
      %v307 = vld [vmem:[#allocation2 + $0x58] sm:$0xff]
      %v308 = vld [vmem:[#allocation2 + $0x60] sm:$0xff]
      %v309 = vld [vmem:[#allocation2 + $0x68] sm:$0xff]
      %v310 = vld [vmem:[#allocation2 + $0x70] sm:$0xff]
      %v311 = vld [vmem:[#allocation2 + $0x78] sm:$0xff]
      %v312 = vld [vmem:[#allocation2 + $0x80] sm:$0xff]
      %v313 = vld [vmem:[#allocation2 + $0x88] sm:$0xff]
      %v314 = vld [vmem:[#allocation2 + $0x90] sm:$0xff]
      %v315 = vld [vmem:[#allocation2 + $0x98] sm:$0xff]
      %v316 = vld [vmem:[#allocation2 + $0xa0] sm:$0xff]
      %v317 = vld [vmem:[#allocation2 + $0xa8] sm:$0xff]
      %v318 = vld [vmem:[#allocation2 + $0xb0] sm:$0xff]
      %v319 = vld [vmem:[#allocation2 + $0xb8] sm:$0xff]
      %v320 = vld [vmem:[#allocation2 + $0xc0] sm:$0xff]
      %v321 = vld [vmem:[#allocation2 + $0xc8] sm:$0xff]
      %v322 = vld [vmem:[#allocation2 + $0xd0] sm:$0xff]
      %v323 = vld [vmem:[#allocation2 + $0xd8] sm:$0xff]
      %v324 = vld [vmem:[#allocation2 + $0xe0] sm:$0xff]
      %v325 = vld [vmem:[#allocation2 + $0xe8] sm:$0xff]
      %v326 = vld [vmem:[#allocation2 + $0xf0] sm:$0xff]
      %v327 = vld [vmem:[#allocation2 + $0xf8] sm:$0xff]
      %v328 = vld [vmem:[%s236] sm:$0xf]
      %v329 = vld [vmem:[%s236 + $0x4] sm:$0xf]
      %v330 = vld [vmem:[%s236 + $0x8] sm:$0xf]
      %v331 = vld [vmem:[%s236 + $0xc] sm:$0xf]
      %v332 = vld [vmem:[%s236 + $0x10] sm:$0xf]
      %v333 = vld [vmem:[%s236 + $0x14] sm:$0xf]
      %v334 = vld [vmem:[%s236 + $0x18] sm:$0xf]
      %v335 = vld [vmem:[%s236 + $0x1c] sm:$0xf]
      %v336 = vld [vmem:[%s236 + $0x20] sm:$0xf]
      %v337 = vld [vmem:[%s236 + $0x24] sm:$0xf]
      %v338 = vld [vmem:[%s236 + $0x28] sm:$0xf]
      %v339 = vld [vmem:[%s236 + $0x2c] sm:$0xf]
      %v340 = vld [vmem:[%s236 + $0x30] sm:$0xf]
      %v341 = vld [vmem:[%s236 + $0x34] sm:$0xf]
      %v342 = vld [vmem:[%s236 + $0x38] sm:$0xf]
      %v343 = vld [vmem:[%s236 + $0x3c] sm:$0xf]
      %v344 = vld [vmem:[%s236 + $0x40] sm:$0xf]
      %v345 = vld [vmem:[%s236 + $0x44] sm:$0xf]
      %v346 = vld [vmem:[%s236 + $0x48] sm:$0xf]
      %v347 = vld [vmem:[%s236 + $0x4c] sm:$0xf]
      %v348 = vld [vmem:[%s236 + $0x50] sm:$0xf]
      %v349 = vld [vmem:[%s236 + $0x54] sm:$0xf]
      %v350 = vld [vmem:[%s236 + $0x58] sm:$0xf]
      %v351 = vld [vmem:[%s236 + $0x5c] sm:$0xf]
      %v352 = vld [vmem:[%s236 + $0x60] sm:$0xf]
      %v353 = vld [vmem:[%s236 + $0x64] sm:$0xf]
      %v354 = vld [vmem:[%s236 + $0x68] sm:$0xf]
      %v355 = vld [vmem:[%s236 + $0x6c] sm:$0xf]
      %v356 = vld [vmem:[%s236 + $0x70] sm:$0xf]
      %v357 = vld [vmem:[%s236 + $0x74] sm:$0xf]
      %v358 = vld [vmem:[%s236 + $0x78] sm:$0xf]
      %v359 = vld [vmem:[%s236 + $0x7c] sm:$0xf]
      %v360 = vld [vmem:[%s245] sm:$0xf]
      %v361 = vld [vmem:[%s245 + $0x4] sm:$0xf]
      %v362 = vld [vmem:[%s245 + $0x8] sm:$0xf]
      %v363 = vld [vmem:[%s245 + $0xc] sm:$0xf]
      %v364 = vld [vmem:[%s245 + $0x10] sm:$0xf]
      %v365 = vld [vmem:[%s245 + $0x14] sm:$0xf]
      %v366 = vld [vmem:[%s245 + $0x18] sm:$0xf]
      %v367 = vld [vmem:[%s245 + $0x1c] sm:$0xf]
      %v368 = vld [vmem:[%s245 + $0x20] sm:$0xf]
      %v369 = vld [vmem:[%s245 + $0x24] sm:$0xf]
      %v370 = vld [vmem:[%s245 + $0x28] sm:$0xf]
      %v371 = vld [vmem:[%s245 + $0x2c] sm:$0xf]
      %v372 = vld [vmem:[%s245 + $0x30] sm:$0xf]
      %v373 = vld [vmem:[%s245 + $0x34] sm:$0xf]
      %v374 = vld [vmem:[%s245 + $0x38] sm:$0xf]
      %v375 = vld [vmem:[%s245 + $0x3c] sm:$0xf]
      %v408 = vunpack.c.l.b16 %v328
      %v409 = vunpack.c.l.b16 %v329
      %v410 = vunpack.c.l.b16 %v330
      %v411 = vunpack.c.l.b16 %v331
      %v412 = vunpack.c.l.b16 %v332
      %v413 = vunpack.c.l.b16 %v333
      %v414 = vunpack.c.l.b16 %v334
      %v415 = vunpack.c.l.b16 %v335
      %v416 = vunpack.c.l.b16 %v336
      %v417 = vunpack.c.l.b16 %v337
      %v418 = vunpack.c.l.b16 %v338
      %v419 = vunpack.c.l.b16 %v339
      %v420 = vunpack.c.l.b16 %v340
      %v421 = vunpack.c.l.b16 %v341
      %v422 = vunpack.c.l.b16 %v342
      %v423 = vunpack.c.l.b16 %v343
      %v424 = vunpack.c.l.b16 %v344
      %v425 = vunpack.c.l.b16 %v345
      %v426 = vunpack.c.l.b16 %v346
      %v427 = vunpack.c.l.b16 %v347
      %v428 = vunpack.c.l.b16 %v348
      %v429 = vunpack.c.l.b16 %v349
      %v430 = vunpack.c.l.b16 %v350
      %v431 = vunpack.c.l.b16 %v351
      %v432 = vunpack.c.l.b16 %v352
      %v433 = vunpack.c.l.b16 %v353
      %v434 = vunpack.c.l.b16 %v354
      %v435 = vunpack.c.l.b16 %v355
      %v436 = vunpack.c.l.b16 %v356
      %v437 = vunpack.c.l.b16 %v357
      %v438 = vunpack.c.l.b16 %v358
      %v439 = vunpack.c.l.b16 %v359
      %v440 = vpack.c.b16 %v409, %v408
      %v441 = vpack.c.b16 %v411, %v410
      %v442 = vpack.c.b16 %v413, %v412
      %v443 = vpack.c.b16 %v415, %v414
      %v444 = vpack.c.b16 %v417, %v416
      %v445 = vpack.c.b16 %v419, %v418
      %v446 = vpack.c.b16 %v421, %v420
      %v447 = vpack.c.b16 %v423, %v422
      %v448 = vpack.c.b16 %v425, %v424
      %v449 = vpack.c.b16 %v427, %v426
      %v450 = vpack.c.b16 %v429, %v428
      %v451 = vpack.c.b16 %v431, %v430
      %v452 = vpack.c.b16 %v433, %v432
      %v453 = vpack.c.b16 %v435, %v434
      %v454 = vpack.c.b16 %v437, %v436
      %v455 = vpack.c.b16 %v439, %v438
      %v488 = vunpack.c.l.b16 %v360
      %v489 = vunpack.c.l.b16 %v361
      %v490 = vunpack.c.l.b16 %v362
      %v491 = vunpack.c.l.b16 %v363
      %v492 = vunpack.c.l.b16 %v364
      %v493 = vunpack.c.l.b16 %v365
      %v494 = vunpack.c.l.b16 %v366
      %v495 = vunpack.c.l.b16 %v367
      %v496 = vunpack.c.l.b16 %v368
      %v497 = vunpack.c.l.b16 %v369
      %v498 = vunpack.c.l.b16 %v370
      %v499 = vunpack.c.l.b16 %v371
      %v500 = vunpack.c.l.b16 %v372
      %v501 = vunpack.c.l.b16 %v373
      %v502 = vunpack.c.l.b16 %v374
      %v503 = vunpack.c.l.b16 %v375
      %v504 = vpack.c.b16 %v489, %v488
      %v505 = vpack.c.b16 %v491, %v490
      %v506 = vpack.c.b16 %v493, %v492
      %v507 = vpack.c.b16 %v495, %v494
      %v508 = vpack.c.b16 %v497, %v496
      %v509 = vpack.c.b16 %v499, %v498
      %v510 = vpack.c.b16 %v501, %v500
      %v511 = vpack.c.b16 %v503, %v502
      %520 = vmatprep.subr.bf16.mxu0 0
      %521 = vmatpush1.bf16.msra.mxu0 %v504
      %522 = vmatprep.subr.bf16.mxu0 0
      %523 = vmatpush1.bf16.msra.mxu0 %v505
      %524 = vmatprep.subr.bf16.mxu0 0
      %525 = vmatpush1.bf16.msra.mxu0 %v506
      %526 = vmatprep.subr.bf16.mxu0 0
      %527 = vmatpush1.bf16.msra.mxu0 %v507
      %528 = vmatprep.subr.bf16.mxu0 0
      %529 = vmatpush1.bf16.msra.mxu0 %v508
      %530 = vmatprep.subr.bf16.mxu0 0
      %531 = vmatpush1.bf16.msra.mxu0 %v509
      %532 = vmatprep.subr.bf16.mxu0 0
      %533 = vmatpush1.bf16.msra.mxu0 %v510
      %534 = vmatprep.subr.bf16.mxu0 0
      %535 = vmatpush1.bf16.msra.mxu0 %v511
      %536 = vmatprep.subr.bf16.mxu0 0
      %537 = vmatpush1.bf16.msra.mxu0 0
      %538 = vmatprep.subr.bf16.mxu0 0
      %539 = vmatpush1.bf16.msra.mxu0 0
      %540 = vmatprep.subr.bf16.mxu0 0
      %541 = vmatpush1.bf16.msra.mxu0 0
      %542 = vmatprep.subr.bf16.mxu0 0
      %543 = vmatpush1.bf16.msra.mxu0 0
      %544 = vmatprep.subr.bf16.mxu0 0
      %545 = vmatpush1.bf16.msra.mxu0 0
      %546 = vmatprep.subr.bf16.mxu0 0
      %547 = vmatpush1.bf16.msra.mxu0 0
      %548 = vmatprep.subr.bf16.mxu0 0
      %549 = vmatpush1.bf16.msra.mxu0 0
      %550 = vmatprep.subr.bf16.mxu0 0
      %551 = vmatpush1.bf16.msra.mxu0 0
      %552 = vmatprep.mubr.bf16.mxu0 0
      %553 = vmatmul.mubr.bf16.gmra.mrb[0].mxu0 %v440
      %v554 = vpop.f32.mrb[0].mxu0
      %v555 = vadd.f32 0.0, %v554
      %v556 = vpop.f32.mrb[0].mxu0
      %v557 = vpop.f32.mrb[0].mxu0
      %v558 = vadd.f32 0.0, %v557
      %v559 = vpop.f32.mrb[0].mxu0
      %560 = vmatprep.mubr.bf16.mxu0 0
      %561 = vmatmul.mubr.bf16.gmra.mrb[0].mxu0 %v441
      %v562 = vpop.f32.mrb[0].mxu0
      %v563 = vadd.f32 0.0, %v562
      %v564 = vpop.f32.mrb[0].mxu0
      %v565 = vpop.f32.mrb[0].mxu0
      %v566 = vadd.f32 0.0, %v565
      %v567 = vpop.f32.mrb[0].mxu0
      %568 = vmatprep.mubr.bf16.mxu0 0
      %569 = vmatmul.mubr.bf16.gmra.mrb[0].mxu0 %v442
      %v570 = vpop.f32.mrb[0].mxu0
      %v571 = vadd.f32 0.0, %v570
      %v572 = vpop.f32.mrb[0].mxu0
      %v573 = vpop.f32.mrb[0].mxu0
      %v574 = vadd.f32 0.0, %v573
      %v575 = vpop.f32.mrb[0].mxu0
      %576 = vmatprep.mubr.bf16.mxu0 0
      %577 = vmatmul.mubr.bf16.gmra.mrb[0].mxu0 %v443
      %v578 = vpop.f32.mrb[0].mxu0
      %v579 = vadd.f32 0.0, %v578
      %v580 = vpop.f32.mrb[0].mxu0
      %v581 = vpop.f32.mrb[0].mxu0
      %v582 = vadd.f32 0.0, %v581
      %v583 = vpop.f32.mrb[0].mxu0
      %584 = vmatprep.mubr.bf16.mxu0 0
      %585 = vmatmul.mubr.bf16.gmra.mrb[0].mxu0 %v444
      %v586 = vpop.f32.mrb[0].mxu0
      %v587 = vadd.f32 0.0, %v586
      %v588 = vpop.f32.mrb[0].mxu0
      %v589 = vpop.f32.mrb[0].mxu0
      %v590 = vadd.f32 0.0, %v589
      %v591 = vpop.f32.mrb[0].mxu0
      %592 = vmatprep.mubr.bf16.mxu0 0
      %593 = vmatmul.mubr.bf16.gmra.mrb[0].mxu0 %v445
      %v594 = vpop.f32.mrb[0].mxu0
      %v595 = vadd.f32 0.0, %v594
      %v596 = vpop.f32.mrb[0].mxu0
      %v597 = vpop.f32.mrb[0].mxu0
      %v598 = vadd.f32 0.0, %v597
      %v599 = vpop.f32.mrb[0].mxu0
      %600 = vmatprep.mubr.bf16.mxu0 0
      %601 = vmatmul.mubr.bf16.gmra.mrb[0].mxu0 %v446
      %v602 = vpop.f32.mrb[0].mxu0
      %v603 = vadd.f32 0.0, %v602
      %v604 = vpop.f32.mrb[0].mxu0
      %v605 = vpop.f32.mrb[0].mxu0
      %v606 = vadd.f32 0.0, %v605
      %v607 = vpop.f32.mrb[0].mxu0
      %608 = vmatprep.mubr.bf16.mxu0 0
      %609 = vmatmul.mubr.bf16.gmra.mrb[0].mxu0 %v447
      %v610 = vpop.f32.mrb[0].mxu0
      %v611 = vadd.f32 0.0, %v610
      %v612 = vpop.f32.mrb[0].mxu0
      %v613 = vpop.f32.mrb[0].mxu0
      %v614 = vadd.f32 0.0, %v613
      %v615 = vpop.f32.mrb[0].mxu0
      %616 = vmatprep.mubr.bf16.mxu0 0
      %617 = vmatmul.mubr.bf16.gmra.mrb[0].mxu0 %v448
      %v618 = vpop.f32.mrb[0].mxu0
      %v619 = vadd.f32 0.0, %v618
      %v620 = vpop.f32.mrb[0].mxu0
      %v621 = vpop.f32.mrb[0].mxu0
      %v622 = vadd.f32 0.0, %v621
      %v623 = vpop.f32.mrb[0].mxu0
      %624 = vmatprep.mubr.bf16.mxu0 0
      %625 = vmatmul.mubr.bf16.gmra.mrb[0].mxu0 %v449
      %v626 = vpop.f32.mrb[0].mxu0
      %v627 = vadd.f32 0.0, %v626
      %v628 = vpop.f32.mrb[0].mxu0
      %v629 = vpop.f32.mrb[0].mxu0
      %v630 = vadd.f32 0.0, %v629
      %v631 = vpop.f32.mrb[0].mxu0
      %632 = vmatprep.mubr.bf16.mxu0 0
      %633 = vmatmul.mubr.bf16.gmra.mrb[0].mxu0 %v450
      %v634 = vpop.f32.mrb[0].mxu0
      %v635 = vadd.f32 0.0, %v634
      %v636 = vpop.f32.mrb[0].mxu0
      %v637 = vpop.f32.mrb[0].mxu0
      %v638 = vadd.f32 0.0, %v637
      %v639 = vpop.f32.mrb[0].mxu0
      %640 = vmatprep.mubr.bf16.mxu0 0
      %641 = vmatmul.mubr.bf16.gmra.mrb[0].mxu0 %v451
      %v642 = vpop.f32.mrb[0].mxu0
      %v643 = vadd.f32 0.0, %v642
      %v644 = vpop.f32.mrb[0].mxu0
      %v645 = vpop.f32.mrb[0].mxu0
      %v646 = vadd.f32 0.0, %v645
      %v647 = vpop.f32.mrb[0].mxu0
      %648 = vmatprep.mubr.bf16.mxu0 0
      %649 = vmatmul.mubr.bf16.gmra.mrb[0].mxu0 %v452
      %v650 = vpop.f32.mrb[0].mxu0
      %v651 = vadd.f32 0.0, %v650
      %v652 = vpop.f32.mrb[0].mxu0
      %v653 = vpop.f32.mrb[0].mxu0
      %v654 = vadd.f32 0.0, %v653
      %v655 = vpop.f32.mrb[0].mxu0
      %656 = vmatprep.mubr.bf16.mxu0 0
      %657 = vmatmul.mubr.bf16.gmra.mrb[0].mxu0 %v453
      %v658 = vpop.f32.mrb[0].mxu0
      %v659 = vadd.f32 0.0, %v658
      %v660 = vpop.f32.mrb[0].mxu0
      %v661 = vpop.f32.mrb[0].mxu0
      %v662 = vadd.f32 0.0, %v661
      %v663 = vpop.f32.mrb[0].mxu0
      %664 = vmatprep.mubr.bf16.mxu0 0
      %665 = vmatmul.mubr.bf16.gmra.mrb[0].mxu0 %v454
      %v666 = vpop.f32.mrb[0].mxu0
      %v667 = vadd.f32 0.0, %v666
      %v668 = vpop.f32.mrb[0].mxu0
      %v669 = vpop.f32.mrb[0].mxu0
      %v670 = vadd.f32 0.0, %v669
      %v671 = vpop.f32.mrb[0].mxu0
      %672 = vmatprep.mubr.bf16.mxu0 0
      %673 = vmatmul.mubr.bf16.gmra.mrb[0].mxu0 %v455
      %v674 = vpop.f32.mrb[0].mxu0
      %v675 = vadd.f32 0.0, %v674
      %v676 = vpop.f32.mrb[0].mxu0
      %v677 = vpop.f32.mrb[0].mxu0
      %v678 = vadd.f32 0.0, %v677
      %v679 = vpop.f32.mrb[0].mxu0
      %680 = vdwg.mxu0
      %v681 = vadd.f32 %v296, %v555
      %v682 = vadd.f32 %v297, %v558
      %v683 = vadd.f32 %v298, %v563
      %v684 = vadd.f32 %v299, %v566
      %v685 = vadd.f32 %v300, %v571
      %v686 = vadd.f32 %v301, %v574
      %v687 = vadd.f32 %v302, %v579
      %v688 = vadd.f32 %v303, %v582
      %v689 = vadd.f32 %v304, %v587
      %v690 = vadd.f32 %v305, %v590
      %v691 = vadd.f32 %v306, %v595
      %v692 = vadd.f32 %v307, %v598
      %v693 = vadd.f32 %v308, %v603
      %v694 = vadd.f32 %v309, %v606
      %v695 = vadd.f32 %v310, %v611
      %v696 = vadd.f32 %v311, %v614
      %v697 = vadd.f32 %v312, %v619
      %v698 = vadd.f32 %v313, %v622
      %v699 = vadd.f32 %v314, %v627
      %v700 = vadd.f32 %v315, %v630
      %v701 = vadd.f32 %v316, %v635
      %v702 = vadd.f32 %v317, %v638
      %v703 = vadd.f32 %v318, %v643
      %v704 = vadd.f32 %v319, %v646
      %v705 = vadd.f32 %v320, %v651
      %v706 = vadd.f32 %v321, %v654
      %v707 = vadd.f32 %v322, %v659
      %v708 = vadd.f32 %v323, %v662
      %v709 = vadd.f32 %v324, %v667
      %v710 = vadd.f32 %v325, %v670
      %v711 = vadd.f32 %v326, %v675
      %v712 = vadd.f32 %v327, %v678
      %713 = vst [vmem:[#allocation2] sm:$0xff] %v681
      %714 = vst [vmem:[#allocation2 + $0x8] sm:$0xff] %v682
      %715 = vst [vmem:[#allocation2 + $0x10] sm:$0xff] %v683
      %716 = vst [vmem:[#allocation2 + $0x18] sm:$0xff] %v684
      %717 = vst [vmem:[#allocation2 + $0x20] sm:$0xff] %v685
      %718 = vst [vmem:[#allocation2 + $0x28] sm:$0xff] %v686
      %719 = vst [vmem:[#allocation2 + $0x30] sm:$0xff] %v687
      %720 = vst [vmem:[#allocation2 + $0x38] sm:$0xff] %v688
      %721 = vst [vmem:[#allocation2 + $0x40] sm:$0xff] %v689
      %722 = vst [vmem:[#allocation2 + $0x48] sm:$0xff] %v690
      %723 = vst [vmem:[#allocation2 + $0x50] sm:$0xff] %v691
      %724 = vst [vmem:[#allocation2 + $0x58] sm:$0xff] %v692
      %725 = vst [vmem:[#allocation2 + $0x60] sm:$0xff] %v693
      %726 = vst [vmem:[#allocation2 + $0x68] sm:$0xff] %v694
      %727 = vst [vmem:[#allocation2 + $0x70] sm:$0xff] %v695
      %728 = vst [vmem:[#allocation2 + $0x78] sm:$0xff] %v696
      %729 = vst [vmem:[#allocation2 + $0x80] sm:$0xff] %v697
      %730 = vst [vmem:[#allocation2 + $0x88] sm:$0xff] %v698
      %731 = vst [vmem:[#allocation2 + $0x90] sm:$0xff] %v699
      %732 = vst [vmem:[#allocation2 + $0x98] sm:$0xff] %v700
      %733 = vst [vmem:[#allocation2 + $0xa0] sm:$0xff] %v701
      %734 = vst [vmem:[#allocation2 + $0xa8] sm:$0xff] %v702
      %735 = vst [vmem:[#allocation2 + $0xb0] sm:$0xff] %v703
      %736 = vst [vmem:[#allocation2 + $0xb8] sm:$0xff] %v704
      %737 = vst [vmem:[#allocation2 + $0xc0] sm:$0xff] %v705
      %738 = vst [vmem:[#allocation2 + $0xc8] sm:$0xff] %v706
      %739 = vst [vmem:[#allocation2 + $0xd0] sm:$0xff] %v707
      %740 = vst [vmem:[#allocation2 + $0xd8] sm:$0xff] %v708
      %741 = vst [vmem:[#allocation2 + $0xe0] sm:$0xff] %v709
      %742 = vst [vmem:[#allocation2 + $0xe8] sm:$0xff] %v710
      %743 = vst [vmem:[#allocation2 + $0xf0] sm:$0xff] %v711
      %744 = vst [vmem:[#allocation2 + $0xf8] sm:$0xff] %v712
      // Predicated region
      $region37: #{_lambda_.5} parent=31 // pred_check
        %p745 = pneg %p260
      $region38: #{_lambda_.5} parent=31 // pred_check_branch
        %747 = sbr.rel (%p745) target = $region40
      $region39: #{_lambda_.5} parent=31 // pred_region
        %v748 = vld [vmem:[#allocation2] sm:$0xff]
        %v749 = vld [vmem:[#allocation2 + $0x8] sm:$0xff]
        %v750 = vld [vmem:[#allocation2 + $0x10] sm:$0xff]
        %v751 = vld [vmem:[#allocation2 + $0x18] sm:$0xff]
        %v752 = vld [vmem:[#allocation2 + $0x20] sm:$0xff]
        %v753 = vld [vmem:[#allocation2 + $0x28] sm:$0xff]
        %v754 = vld [vmem:[#allocation2 + $0x30] sm:$0xff]
        %v755 = vld [vmem:[#allocation2 + $0x38] sm:$0xff]
        %v756 = vld [vmem:[#allocation2 + $0x40] sm:$0xff]
        %v757 = vld [vmem:[#allocation2 + $0x48] sm:$0xff]
        %v758 = vld [vmem:[#allocation2 + $0x50] sm:$0xff]
        %v759 = vld [vmem:[#allocation2 + $0x58] sm:$0xff]
        %v760 = vld [vmem:[#allocation2 + $0x60] sm:$0xff]
        %v761 = vld [vmem:[#allocation2 + $0x68] sm:$0xff]
        %v762 = vld [vmem:[#allocation2 + $0x70] sm:$0xff]
        %v763 = vld [vmem:[#allocation2 + $0x78] sm:$0xff]
        %v764 = vld [vmem:[#allocation2 + $0x80] sm:$0xff]
        %v765 = vld [vmem:[#allocation2 + $0x88] sm:$0xff]
        %v766 = vld [vmem:[#allocation2 + $0x90] sm:$0xff]
        %v767 = vld [vmem:[#allocation2 + $0x98] sm:$0xff]
        %v768 = vld [vmem:[#allocation2 + $0xa0] sm:$0xff]
        %v769 = vld [vmem:[#allocation2 + $0xa8] sm:$0xff]
        %v770 = vld [vmem:[#allocation2 + $0xb0] sm:$0xff]
        %v771 = vld [vmem:[#allocation2 + $0xb8] sm:$0xff]
        %v772 = vld [vmem:[#allocation2 + $0xc0] sm:$0xff]
        %v773 = vld [vmem:[#allocation2 + $0xc8] sm:$0xff]
        %v774 = vld [vmem:[#allocation2 + $0xd0] sm:$0xff]
        %v775 = vld [vmem:[#allocation2 + $0xd8] sm:$0xff]
        %v776 = vld [vmem:[#allocation2 + $0xe0] sm:$0xff]
        %v777 = vld [vmem:[#allocation2 + $0xe8] sm:$0xff]
        %v778 = vld [vmem:[#allocation2 + $0xf0] sm:$0xff]
        %v779 = vld [vmem:[#allocation2 + $0xf8] sm:$0xff]
        %v780 = vld [vmem:[%s249] sm:$0x1]
        %v782 = vlaneseq
        %v783 = vshrl.u32 %v782, 7
        %v784 = vsub.s32 0, %v783
        %v785 = vrot.slane %v780, %v784
        %v787 = vadd.f32 %v748, %v785
        %v788 = vadd.f32 %v749, %v785
        %v789 = vadd.f32 %v750, %v785
        %v790 = vadd.f32 %v751, %v785
        %v791 = vadd.f32 %v752, %v785
        %v792 = vadd.f32 %v753, %v785
        %v793 = vadd.f32 %v754, %v785
        %v794 = vadd.f32 %v755, %v785
        %v795 = vadd.f32 %v756, %v785
        %v796 = vadd.f32 %v757, %v785
        %v797 = vadd.f32 %v758, %v785
        %v798 = vadd.f32 %v759, %v785
        %v799 = vadd.f32 %v760, %v785
        %v800 = vadd.f32 %v761, %v785
        %v801 = vadd.f32 %v762, %v785
        %v802 = vadd.f32 %v763, %v785
        %v803 = vadd.f32 %v764, %v785
        %v804 = vadd.f32 %v765, %v785
        %v805 = vadd.f32 %v766, %v785
        %v806 = vadd.f32 %v767, %v785
        %v807 = vadd.f32 %v768, %v785
        %v808 = vadd.f32 %v769, %v785
        %v809 = vadd.f32 %v770, %v785
        %v810 = vadd.f32 %v771, %v785
        %v811 = vadd.f32 %v772, %v785
        %v812 = vadd.f32 %v773, %v785
        %v813 = vadd.f32 %v774, %v785
        %v814 = vadd.f32 %v775, %v785
        %v815 = vadd.f32 %v776, %v785
        %v816 = vadd.f32 %v777, %v785
        %v817 = vadd.f32 %v778, %v785
        %v818 = vadd.f32 %v779, %v785
        %v819 = vmax.f32 %v787, 0.0
        %v820 = vmax.f32 %v788, 0.0
        %v821 = vmax.f32 %v789, 0.0
        %v822 = vmax.f32 %v790, 0.0
        %v823 = vmax.f32 %v791, 0.0
        %v824 = vmax.f32 %v792, 0.0
        %v825 = vmax.f32 %v793, 0.0
        %v826 = vmax.f32 %v794, 0.0
        %v827 = vmax.f32 %v795, 0.0
        %v828 = vmax.f32 %v796, 0.0
        %v829 = vmax.f32 %v797, 0.0
        %v830 = vmax.f32 %v798, 0.0
        %v831 = vmax.f32 %v799, 0.0
        %v832 = vmax.f32 %v800, 0.0
        %v833 = vmax.f32 %v801, 0.0
        %v834 = vmax.f32 %v802, 0.0
        %v835 = vmax.f32 %v803, 0.0
        %v836 = vmax.f32 %v804, 0.0
        %v837 = vmax.f32 %v805, 0.0
        %v838 = vmax.f32 %v806, 0.0
        %v839 = vmax.f32 %v807, 0.0
        %v840 = vmax.f32 %v808, 0.0
        %v841 = vmax.f32 %v809, 0.0
        %v842 = vmax.f32 %v810, 0.0
        %v843 = vmax.f32 %v811, 0.0
        %v844 = vmax.f32 %v812, 0.0
        %v845 = vmax.f32 %v813, 0.0
        %v846 = vmax.f32 %v814, 0.0
        %v847 = vmax.f32 %v815, 0.0
        %v848 = vmax.f32 %v816, 0.0
        %v849 = vmax.f32 %v817, 0.0
        %v850 = vmax.f32 %v818, 0.0
        %851 = vst [vmem:[%s257] sm:$0xff] %v819
        %852 = vst [vmem:[%s257 + $0x8] sm:$0xff] %v820
        %853 = vst [vmem:[%s257 + $0x10] sm:$0xff] %v821
        %854 = vst [vmem:[%s257 + $0x18] sm:$0xff] %v822
        %855 = vst [vmem:[%s257 + $0x20] sm:$0xff] %v823
        %856 = vst [vmem:[%s257 + $0x28] sm:$0xff] %v824
        %857 = vst [vmem:[%s257 + $0x30] sm:$0xff] %v825
        %858 = vst [vmem:[%s257 + $0x38] sm:$0xff] %v826
        %859 = vst [vmem:[%s257 + $0x40] sm:$0xff] %v827
        %860 = vst [vmem:[%s257 + $0x48] sm:$0xff] %v828
        %861 = vst [vmem:[%s257 + $0x50] sm:$0xff] %v829
        %862 = vst [vmem:[%s257 + $0x58] sm:$0xff] %v830
        %863 = vst [vmem:[%s257 + $0x60] sm:$0xff] %v831
        %864 = vst [vmem:[%s257 + $0x68] sm:$0xff] %v832
        %865 = vst [vmem:[%s257 + $0x70] sm:$0xff] %v833
        %866 = vst [vmem:[%s257 + $0x78] sm:$0xff] %v834
        %867 = vst [vmem:[%s257 + $0x80] sm:$0xff] %v835
        %868 = vst [vmem:[%s257 + $0x88] sm:$0xff] %v836
        %869 = vst [vmem:[%s257 + $0x90] sm:$0xff] %v837
        %870 = vst [vmem:[%s257 + $0x98] sm:$0xff] %v838
        %871 = vst [vmem:[%s257 + $0xa0] sm:$0xff] %v839
        %872 = vst [vmem:[%s257 + $0xa8] sm:$0xff] %v840
        %873 = vst [vmem:[%s257 + $0xb0] sm:$0xff] %v841
        %874 = vst [vmem:[%s257 + $0xb8] sm:$0xff] %v842
        %875 = vst [vmem:[%s257 + $0xc0] sm:$0xff] %v843
        %876 = vst [vmem:[%s257 + $0xc8] sm:$0xff] %v844
        %877 = vst [vmem:[%s257 + $0xd0] sm:$0xff] %v845
        %878 = vst [vmem:[%s257 + $0xd8] sm:$0xff] %v846
        %879 = vst [vmem:[%s257 + $0xe0] sm:$0xff] %v847
        %880 = vst [vmem:[%s257 + $0xe8] sm:$0xff] %v848
        %881 = vst [vmem:[%s257 + $0xf0] sm:$0xff] %v849
        %882 = vst [vmem:[%s257 + $0xf8] sm:$0xff] %v850
      $region40: #{_lambda_.5} parent=31 // pred_fallthru
        _
      %s883 = smul.u32 32, %s19
      %p884 = scmp.lt.s32.totalorder %s883, 63
      %s885 = scalar_select %p884, %s883, 63
      %p886 = scmp.lt.s32.totalorder %s20, 0
      %s887 = scalar_select %p886, %s20, 0
      %s888 = sadd.s32 %s887, %s885
      %s889 = smul.addr %s888, 8
      %s890 = scalar_lea.vmem %s3, %s889
      // Predicated region
      $region41: #{_lambda_.5} parent=31 // pred_check
        %p891 = pneg %p135
      $region42: #{_lambda_.5} parent=31 // pred_check_branch
        %893 = sbr.rel (%p891) target = $region44
      $region43: #{_lambda_.5} parent=31 // pred_region
        %s894 = smul.u32 32, %s19
      $region44: #{_lambda_.5} parent=31 // pred_fallthru
        _
    $region32: #{_lambda_.5} parent=5 // pred_fallthru
      _
    %p895 = scmp.le.s32.totalorder 2, %s9
    // Predicated region
    $region45: #{_lambda_.5} parent=5 // pred_check
      %p896 = pneg %p895
    $region46: #{_lambda_.5} parent=5 // pred_check_branch
      %898 = sbr.rel (%p896) target = $region48
    $region47: #{_lambda_.5} parent=5 // pred_region
      %s899 = ssub.s32 %s9, 2
      // Predicated region
      $region49: #{_lambda_.5} parent=47 // pred_check
        %p900 = pneg %p141
      $region50: #{_lambda_.5} parent=47 // pred_check_branch
        %902 = sbr.rel (%p900) target = $region52
      $region51: #{_lambda_.5} parent=47 // pred_region
        %s903 = smul.u32 32, %s22
        %p904 = scmp.lt.s32.totalorder %s903, 63
        %s905 = scalar_select %p904, %s903, 63
        %p906 = scmp.lt.s32.totalorder %s23, 0
        %s907 = scalar_select %p906, %s23, 0
        %s908 = sadd.s32 %s907, %s905
        %s909 = smul.addr %s908, 8
        %s910 = scalar_lea.vmem %s3, %s909
      $region52: #{_lambda_.5} parent=47 // pred_fallthru
        _
    $region48: #{_lambda_.5} parent=5 // pred_fallthru
      _
  $region6: #{_lambda_.5} parent=0 // loop_footer
    %s13 = sadd.s32 1, %s9
  $region7: #{_lambda_.5} parent=0 // loop_footer_branch
    %8 = sbr.rel target = $region3
  $region8: #{_lambda_.5} parent=0 // loop_exit
    _

// kernel: _lambda_.6
$region0: #{_lambda_.6}
  #allocation0 [shape = 'u32[]', space=smem, size = 0x4, offset = 0x4, fixed_abs, tag = 'smem constant byte address 0x4 - core index']
  #allocation1 [shape = 'u32[144,128]{1,0:T(1,128)}', space=vmem, size = 0x12000, scoped, tag = 'internal scratch']
  #allocation2 [shape = 'f32[128,128]{1,0:T(8,128)}', space=vmem, size = 0x10000, scoped, tag = 'scratch operand']
  %s0 = inlined_call_operand.vmem [shape: bf16[128,128], index: 0, kind: input, shape index: {}]
  %s1 = inlined_call_operand.vmem [shape: bf16[128,128], index: 1, kind: input, shape index: {}]
  %s2 = inlined_call_operand.vmem [shape: f32[1,128], index: 2, kind: input, shape index: {}]
  %s3 = inlined_call_operand.vmem [shape: f32[128,128], index: 3, kind: output, shape index: {}]
  %s4 = sld [smem:[#allocation0]]
  $region30: #{_lambda_.6} parent=0
    _
  %s6 = ssub.s32 1, %s4
  %s7 = scalar_select 0, %s6, %s4
  // Predicated region
  $region2: #{_lambda_.6} parent=0 // pred_check
    _
  $region3: #{_lambda_.6} parent=0 // pred_check_branch
    %9 = sbr.rel (0) target = $region5
  $region4: #{_lambda_.6} parent=0 // pred_region
    _
  $region5: #{_lambda_.6} parent=0 // pred_fallthru
    _
  // Predicated region
  $region6: #{_lambda_.6} parent=0 // pred_check
    _
  $region7: #{_lambda_.6} parent=0 // pred_check_branch
    %11 = sbr.rel (0) target = $region9
  $region8: #{_lambda_.6} parent=0 // pred_region
    _
  $region9: #{_lambda_.6} parent=0 // pred_fallthru
    _
  // Predicated region
  $region10: #{_lambda_.6} parent=0 // pred_check
    _
  $region11: #{_lambda_.6} parent=0 // pred_check_branch
    %13 = sbr.rel (0) target = $region13
  $region12: #{_lambda_.6} parent=0 // pred_region
    _
  $region13: #{_lambda_.6} parent=0 // pred_fallthru
    _
  %p15 = scmp.eq.s32.totalorder 0, 0
  // Predicated region
  $region14: #{_lambda_.6} parent=0 // pred_check
    %p16 = pneg %p15
  $region15: #{_lambda_.6} parent=0 // pred_check_branch
    %18 = sbr.rel (%p16) target = $region17
  $region16: #{_lambda_.6} parent=0 // pred_region
    %19 = vst [vmem:[#allocation2] sm:$0xff] 0.0
    %20 = vst [vmem:[#allocation2 + $0x8] sm:$0xff] 0.0
    %21 = vst [vmem:[#allocation2 + $0x10] sm:$0xff] 0.0
    %22 = vst [vmem:[#allocation2 + $0x18] sm:$0xff] 0.0
    %23 = vst [vmem:[#allocation2 + $0x20] sm:$0xff] 0.0
    %24 = vst [vmem:[#allocation2 + $0x28] sm:$0xff] 0.0
    %25 = vst [vmem:[#allocation2 + $0x30] sm:$0xff] 0.0
    %26 = vst [vmem:[#allocation2 + $0x38] sm:$0xff] 0.0
    %27 = vst [vmem:[#allocation2 + $0x40] sm:$0xff] 0.0
    %28 = vst [vmem:[#allocation2 + $0x48] sm:$0xff] 0.0
    %29 = vst [vmem:[#allocation2 + $0x50] sm:$0xff] 0.0
    %30 = vst [vmem:[#allocation2 + $0x58] sm:$0xff] 0.0
    %31 = vst [vmem:[#allocation2 + $0x60] sm:$0xff] 0.0
    %32 = vst [vmem:[#allocation2 + $0x68] sm:$0xff] 0.0
    %33 = vst [vmem:[#allocation2 + $0x70] sm:$0xff] 0.0
    %34 = vst [vmem:[#allocation2 + $0x78] sm:$0xff] 0.0
  $region17: #{_lambda_.6} parent=0 // pred_fallthru
    _
  %v35 = vld [vmem:[#allocation2] sm:$0xff]
  %v36 = vld [vmem:[#allocation2 + $0x8] sm:$0xff]
  %v37 = vld [vmem:[#allocation2 + $0x10] sm:$0xff]
  %v38 = vld [vmem:[#allocation2 + $0x18] sm:$0xff]
  %v39 = vld [vmem:[#allocation2 + $0x20] sm:$0xff]
  %v40 = vld [vmem:[#allocation2 + $0x28] sm:$0xff]
  %v41 = vld [vmem:[#allocation2 + $0x30] sm:$0xff]
  %v42 = vld [vmem:[#allocation2 + $0x38] sm:$0xff]
  %v43 = vld [vmem:[#allocation2 + $0x40] sm:$0xff]
  %v44 = vld [vmem:[#allocation2 + $0x48] sm:$0xff]
  %v45 = vld [vmem:[#allocation2 + $0x50] sm:$0xff]
  %v46 = vld [vmem:[#allocation2 + $0x58] sm:$0xff]
  %v47 = vld [vmem:[#allocation2 + $0x60] sm:$0xff]
  %v48 = vld [vmem:[#allocation2 + $0x68] sm:$0xff]
  %v49 = vld [vmem:[#allocation2 + $0x70] sm:$0xff]
  %v50 = vld [vmem:[#allocation2 + $0x78] sm:$0xff]
  %v51 = vld [vmem:[%s0] sm:$0xf]
  %v52 = vld [vmem:[%s0 + $0x4] sm:$0xf]
  %v53 = vld [vmem:[%s0 + $0x8] sm:$0xf]
  %v54 = vld [vmem:[%s0 + $0xc] sm:$0xf]
  %v55 = vld [vmem:[%s0 + $0x10] sm:$0xf]
  %v56 = vld [vmem:[%s0 + $0x14] sm:$0xf]
  %v57 = vld [vmem:[%s0 + $0x18] sm:$0xf]
  %v58 = vld [vmem:[%s0 + $0x1c] sm:$0xf]
  %v59 = vld [vmem:[%s0 + $0x20] sm:$0xf]
  %v60 = vld [vmem:[%s0 + $0x24] sm:$0xf]
  %v61 = vld [vmem:[%s0 + $0x28] sm:$0xf]
  %v62 = vld [vmem:[%s0 + $0x2c] sm:$0xf]
  %v63 = vld [vmem:[%s0 + $0x30] sm:$0xf]
  %v64 = vld [vmem:[%s0 + $0x34] sm:$0xf]
  %v65 = vld [vmem:[%s0 + $0x38] sm:$0xf]
  %v66 = vld [vmem:[%s0 + $0x3c] sm:$0xf]
  %v67 = vld [vmem:[%s1] sm:$0xf]
  %v68 = vld [vmem:[%s1 + $0x4] sm:$0xf]
  %v69 = vld [vmem:[%s1 + $0x8] sm:$0xf]
  %v70 = vld [vmem:[%s1 + $0xc] sm:$0xf]
  %v71 = vld [vmem:[%s1 + $0x10] sm:$0xf]
  %v72 = vld [vmem:[%s1 + $0x14] sm:$0xf]
  %v73 = vld [vmem:[%s1 + $0x18] sm:$0xf]
  %v74 = vld [vmem:[%s1 + $0x1c] sm:$0xf]
  %v75 = vld [vmem:[%s1 + $0x20] sm:$0xf]
  %v76 = vld [vmem:[%s1 + $0x24] sm:$0xf]
  %v77 = vld [vmem:[%s1 + $0x28] sm:$0xf]
  %v78 = vld [vmem:[%s1 + $0x2c] sm:$0xf]
  %v79 = vld [vmem:[%s1 + $0x30] sm:$0xf]
  %v80 = vld [vmem:[%s1 + $0x34] sm:$0xf]
  %v81 = vld [vmem:[%s1 + $0x38] sm:$0xf]
  %v82 = vld [vmem:[%s1 + $0x3c] sm:$0xf]
  %v99 = vunpack.c.l.b16 %v51
  %v100 = vunpack.c.l.b16 %v52
  %v101 = vunpack.c.l.b16 %v53
  %v102 = vunpack.c.l.b16 %v54
  %v103 = vunpack.c.l.b16 %v55
  %v104 = vunpack.c.l.b16 %v56
  %v105 = vunpack.c.l.b16 %v57
  %v106 = vunpack.c.l.b16 %v58
  %v107 = vunpack.c.l.b16 %v59
  %v108 = vunpack.c.l.b16 %v60
  %v109 = vunpack.c.l.b16 %v61
  %v110 = vunpack.c.l.b16 %v62
  %v111 = vunpack.c.l.b16 %v63
  %v112 = vunpack.c.l.b16 %v64
  %v113 = vunpack.c.l.b16 %v65
  %v114 = vunpack.c.l.b16 %v66
  %v115 = vpack.c.b16 %v100, %v99
  %v116 = vpack.c.b16 %v102, %v101
  %v117 = vpack.c.b16 %v104, %v103
  %v118 = vpack.c.b16 %v106, %v105
  %v119 = vpack.c.b16 %v108, %v107
  %v120 = vpack.c.b16 %v110, %v109
  %v121 = vpack.c.b16 %v112, %v111
  %v122 = vpack.c.b16 %v114, %v113
  %v147 = vunpack.c.l.b16 %v67
  %v148 = vunpack.c.l.b16 %v68
  %v149 = vunpack.c.l.b16 %v69
  %v150 = vunpack.c.l.b16 %v70
  %v151 = vunpack.c.l.b16 %v71
  %v152 = vunpack.c.l.b16 %v72
  %v153 = vunpack.c.l.b16 %v73
  %v154 = vunpack.c.l.b16 %v74
  %v155 = vunpack.c.l.b16 %v75
  %v156 = vunpack.c.l.b16 %v76
  %v157 = vunpack.c.l.b16 %v77
  %v158 = vunpack.c.l.b16 %v78
  %v159 = vunpack.c.l.b16 %v79
  %v160 = vunpack.c.l.b16 %v80
  %v161 = vunpack.c.l.b16 %v81
  %v162 = vunpack.c.l.b16 %v82
  %v163 = vpack.c.b16 %v148, %v147
  %v164 = vpack.c.b16 %v150, %v149
  %v165 = vpack.c.b16 %v152, %v151
  %v166 = vpack.c.b16 %v154, %v153
  %v167 = vpack.c.b16 %v156, %v155
  %v168 = vpack.c.b16 %v158, %v157
  %v169 = vpack.c.b16 %v160, %v159
  %v170 = vpack.c.b16 %v162, %v161
  %179 = vmatprep.subr.bf16.mxu0 0
  %180 = vmatpush1.bf16.msra.mxu0 %v163
  %181 = vmatprep.subr.bf16.mxu0 0
  %182 = vmatpush1.bf16.msra.mxu0 %v164
  %183 = vmatprep.subr.bf16.mxu0 0
  %184 = vmatpush1.bf16.msra.mxu0 %v165
  %185 = vmatprep.subr.bf16.mxu0 0
  %186 = vmatpush1.bf16.msra.mxu0 %v166
  %187 = vmatprep.subr.bf16.mxu0 0
  %188 = vmatpush1.bf16.msra.mxu0 %v167
  %189 = vmatprep.subr.bf16.mxu0 0
  %190 = vmatpush1.bf16.msra.mxu0 %v168
  %191 = vmatprep.subr.bf16.mxu0 0
  %192 = vmatpush1.bf16.msra.mxu0 %v169
  %193 = vmatprep.subr.bf16.mxu0 0
  %194 = vmatpush1.bf16.msra.mxu0 %v170
  %195 = vmatprep.subr.bf16.mxu0 0
  %196 = vmatpush1.bf16.msra.mxu0 0
  %197 = vmatprep.subr.bf16.mxu0 0
  %198 = vmatpush1.bf16.msra.mxu0 0
  %199 = vmatprep.subr.bf16.mxu0 0
  %200 = vmatpush1.bf16.msra.mxu0 0
  %201 = vmatprep.subr.bf16.mxu0 0
  %202 = vmatpush1.bf16.msra.mxu0 0
  %203 = vmatprep.subr.bf16.mxu0 0
  %204 = vmatpush1.bf16.msra.mxu0 0
  %205 = vmatprep.subr.bf16.mxu0 0
  %206 = vmatpush1.bf16.msra.mxu0 0
  %207 = vmatprep.subr.bf16.mxu0 0
  %208 = vmatpush1.bf16.msra.mxu0 0
  %209 = vmatprep.subr.bf16.mxu0 0
  %210 = vmatpush1.bf16.msra.mxu0 0
  %211 = vmatprep.mubr.bf16.mxu0 0
  %212 = vmatmul.mubr.bf16.gmra.mrb[0].mxu0 %v115
  %v213 = vpop.f32.mrb[0].mxu0
  %v214 = vadd.f32 0.0, %v213
  %v215 = vpop.f32.mrb[0].mxu0
  %v216 = vpop.f32.mrb[0].mxu0
  %v217 = vadd.f32 0.0, %v216
  %v218 = vpop.f32.mrb[0].mxu0
  %219 = vmatprep.mubr.bf16.mxu0 0
  %220 = vmatmul.mubr.bf16.gmra.mrb[0].mxu0 %v116
  %v221 = vpop.f32.mrb[0].mxu0
  %v222 = vadd.f32 0.0, %v221
  %v223 = vpop.f32.mrb[0].mxu0
  %v224 = vpop.f32.mrb[0].mxu0
  %v225 = vadd.f32 0.0, %v224
  %v226 = vpop.f32.mrb[0].mxu0
  %227 = vmatprep.mubr.bf16.mxu0 0
  %228 = vmatmul.mubr.bf16.gmra.mrb[0].mxu0 %v117
  %v229 = vpop.f32.mrb[0].mxu0
  %v230 = vadd.f32 0.0, %v229
  %v231 = vpop.f32.mrb[0].mxu0
  %v232 = vpop.f32.mrb[0].mxu0
  %v233 = vadd.f32 0.0, %v232
  %v234 = vpop.f32.mrb[0].mxu0
  %235 = vmatprep.mubr.bf16.mxu0 0
  %236 = vmatmul.mubr.bf16.gmra.mrb[0].mxu0 %v118
  %v237 = vpop.f32.mrb[0].mxu0
  %v238 = vadd.f32 0.0, %v237
  %v239 = vpop.f32.mrb[0].mxu0
  %v240 = vpop.f32.mrb[0].mxu0
  %v241 = vadd.f32 0.0, %v240
  %v242 = vpop.f32.mrb[0].mxu0
  %243 = vmatprep.mubr.bf16.mxu0 0
  %244 = vmatmul.mubr.bf16.gmra.mrb[0].mxu0 %v119
  %v245 = vpop.f32.mrb[0].mxu0
  %v246 = vadd.f32 0.0, %v245
  %v247 = vpop.f32.mrb[0].mxu0
  %v248 = vpop.f32.mrb[0].mxu0
  %v249 = vadd.f32 0.0, %v248
  %v250 = vpop.f32.mrb[0].mxu0
  %251 = vmatprep.mubr.bf16.mxu0 0
  %252 = vmatmul.mubr.bf16.gmra.mrb[0].mxu0 %v120
  %v253 = vpop.f32.mrb[0].mxu0
  %v254 = vadd.f32 0.0, %v253
  %v255 = vpop.f32.mrb[0].mxu0
  %v256 = vpop.f32.mrb[0].mxu0
  %v257 = vadd.f32 0.0, %v256
  %v258 = vpop.f32.mrb[0].mxu0
  %259 = vmatprep.mubr.bf16.mxu0 0
  %260 = vmatmul.mubr.bf16.gmra.mrb[0].mxu0 %v121
  %v261 = vpop.f32.mrb[0].mxu0
  %v262 = vadd.f32 0.0, %v261
  %v263 = vpop.f32.mrb[0].mxu0
  %v264 = vpop.f32.mrb[0].mxu0
  %v265 = vadd.f32 0.0, %v264
  %v266 = vpop.f32.mrb[0].mxu0
  %267 = vmatprep.mubr.bf16.mxu0 0
  %268 = vmatmul.mubr.bf16.gmra.mrb[0].mxu0 %v122
  %v269 = vpop.f32.mrb[0].mxu0
  %v270 = vadd.f32 0.0, %v269
  %v271 = vpop.f32.mrb[0].mxu0
  %v272 = vpop.f32.mrb[0].mxu0
  %v273 = vadd.f32 0.0, %v272
  %v274 = vpop.f32.mrb[0].mxu0
  %275 = vdwg.mxu0
  %v276 = vadd.f32 %v35, %v214
  %v277 = vadd.f32 %v36, %v217
  %v278 = vadd.f32 %v37, %v222
  %v279 = vadd.f32 %v38, %v225
  %v280 = vadd.f32 %v39, %v230
  %v281 = vadd.f32 %v40, %v233
  %v282 = vadd.f32 %v41, %v238
  %v283 = vadd.f32 %v42, %v241
  %v284 = vadd.f32 %v43, %v246
  %v285 = vadd.f32 %v44, %v249
  %v286 = vadd.f32 %v45, %v254
  %v287 = vadd.f32 %v46, %v257
  %v288 = vadd.f32 %v47, %v262
  %v289 = vadd.f32 %v48, %v265
  %v290 = vadd.f32 %v49, %v270
  %v291 = vadd.f32 %v50, %v273
  %292 = vst [vmem:[#allocation2] sm:$0xff] %v276
  %293 = vst [vmem:[#allocation2 + $0x8] sm:$0xff] %v277
  %294 = vst [vmem:[#allocation2 + $0x10] sm:$0xff] %v278
  %295 = vst [vmem:[#allocation2 + $0x18] sm:$0xff] %v279
  %296 = vst [vmem:[#allocation2 + $0x20] sm:$0xff] %v280
  %297 = vst [vmem:[#allocation2 + $0x28] sm:$0xff] %v281
  %298 = vst [vmem:[#allocation2 + $0x30] sm:$0xff] %v282
  %299 = vst [vmem:[#allocation2 + $0x38] sm:$0xff] %v283
  %300 = vst [vmem:[#allocation2 + $0x40] sm:$0xff] %v284
  %301 = vst [vmem:[#allocation2 + $0x48] sm:$0xff] %v285
  %302 = vst [vmem:[#allocation2 + $0x50] sm:$0xff] %v286
  %303 = vst [vmem:[#allocation2 + $0x58] sm:$0xff] %v287
  %304 = vst [vmem:[#allocation2 + $0x60] sm:$0xff] %v288
  %305 = vst [vmem:[#allocation2 + $0x68] sm:$0xff] %v289
  %306 = vst [vmem:[#allocation2 + $0x70] sm:$0xff] %v290
  %307 = vst [vmem:[#allocation2 + $0x78] sm:$0xff] %v291
  // Predicated region
  $region18: #{_lambda_.6} parent=0 // pred_check
    %p308 = pneg %p15
  $region19: #{_lambda_.6} parent=0 // pred_check_branch
    %310 = sbr.rel (%p308) target = $region21
  $region20: #{_lambda_.6} parent=0 // pred_region
    %v311 = vld [vmem:[#allocation2] sm:$0xff]
    %v312 = vld [vmem:[#allocation2 + $0x8] sm:$0xff]
    %v313 = vld [vmem:[#allocation2 + $0x10] sm:$0xff]
    %v314 = vld [vmem:[#allocation2 + $0x18] sm:$0xff]
    %v315 = vld [vmem:[#allocation2 + $0x20] sm:$0xff]
    %v316 = vld [vmem:[#allocation2 + $0x28] sm:$0xff]
    %v317 = vld [vmem:[#allocation2 + $0x30] sm:$0xff]
    %v318 = vld [vmem:[#allocation2 + $0x38] sm:$0xff]
    %v319 = vld [vmem:[#allocation2 + $0x40] sm:$0xff]
    %v320 = vld [vmem:[#allocation2 + $0x48] sm:$0xff]
    %v321 = vld [vmem:[#allocation2 + $0x50] sm:$0xff]
    %v322 = vld [vmem:[#allocation2 + $0x58] sm:$0xff]
    %v323 = vld [vmem:[#allocation2 + $0x60] sm:$0xff]
    %v324 = vld [vmem:[#allocation2 + $0x68] sm:$0xff]
    %v325 = vld [vmem:[#allocation2 + $0x70] sm:$0xff]
    %v326 = vld [vmem:[#allocation2 + $0x78] sm:$0xff]
    %v327 = vld [vmem:[%s2] sm:$0x1]
    %v329 = vlaneseq
    %v330 = vshrl.u32 %v329, 7
    %v331 = vsub.s32 0, %v330
    %v332 = vrot.slane %v327, %v331
    %v334 = vadd.f32 %v311, %v332
    %v335 = vadd.f32 %v312, %v332
    %v336 = vadd.f32 %v313, %v332
    %v337 = vadd.f32 %v314, %v332
    %v338 = vadd.f32 %v315, %v332
    %v339 = vadd.f32 %v316, %v332
    %v340 = vadd.f32 %v317, %v332
    %v341 = vadd.f32 %v318, %v332
    %v342 = vadd.f32 %v319, %v332
    %v343 = vadd.f32 %v320, %v332
    %v344 = vadd.f32 %v321, %v332
    %v345 = vadd.f32 %v322, %v332
    %v346 = vadd.f32 %v323, %v332
    %v347 = vadd.f32 %v324, %v332
    %v348 = vadd.f32 %v325, %v332
    %v349 = vadd.f32 %v326, %v332
    %v350 = vmax.f32 %v334, 0.0
    %v351 = vmax.f32 %v335, 0.0
    %v352 = vmax.f32 %v336, 0.0
    %v353 = vmax.f32 %v337, 0.0
    %v354 = vmax.f32 %v338, 0.0
    %v355 = vmax.f32 %v339, 0.0
    %v356 = vmax.f32 %v340, 0.0
    %v357 = vmax.f32 %v341, 0.0
    %v358 = vmax.f32 %v342, 0.0
    %v359 = vmax.f32 %v343, 0.0
    %v360 = vmax.f32 %v344, 0.0
    %v361 = vmax.f32 %v345, 0.0
    %v362 = vmax.f32 %v346, 0.0
    %v363 = vmax.f32 %v347, 0.0
    %v364 = vmax.f32 %v348, 0.0
    %v365 = vmax.f32 %v349, 0.0
    %366 = vst [vmem:[%s3] sm:$0xff] %v350
    %367 = vst [vmem:[%s3 + $0x8] sm:$0xff] %v351
    %368 = vst [vmem:[%s3 + $0x10] sm:$0xff] %v352
    %369 = vst [vmem:[%s3 + $0x18] sm:$0xff] %v353
    %370 = vst [vmem:[%s3 + $0x20] sm:$0xff] %v354
    %371 = vst [vmem:[%s3 + $0x28] sm:$0xff] %v355
    %372 = vst [vmem:[%s3 + $0x30] sm:$0xff] %v356
    %373 = vst [vmem:[%s3 + $0x38] sm:$0xff] %v357
    %374 = vst [vmem:[%s3 + $0x40] sm:$0xff] %v358
    %375 = vst [vmem:[%s3 + $0x48] sm:$0xff] %v359
    %376 = vst [vmem:[%s3 + $0x50] sm:$0xff] %v360
    %377 = vst [vmem:[%s3 + $0x58] sm:$0xff] %v361
    %378 = vst [vmem:[%s3 + $0x60] sm:$0xff] %v362
    %379 = vst [vmem:[%s3 + $0x68] sm:$0xff] %v363
    %380 = vst [vmem:[%s3 + $0x70] sm:$0xff] %v364
    %381 = vst [vmem:[%s3 + $0x78] sm:$0xff] %v365
  $region21: #{_lambda_.6} parent=0 // pred_fallthru
    _
  // Predicated region
  $region22: #{_lambda_.6} parent=0 // pred_check
    _
  $region23: #{_lambda_.6} parent=0 // pred_check_branch
    %383 = sbr.rel (0) target = $region25
  $region24: #{_lambda_.6} parent=0 // pred_region
    _
  $region25: #{_lambda_.6} parent=0 // pred_fallthru
    _
  // Predicated region
  $region26: #{_lambda_.6} parent=0 // pred_check
    _
  $region27: #{_lambda_.6} parent=0 // pred_check_branch
    %385 = sbr.rel (0) target = $region29
  $region28: #{_lambda_.6} parent=0 // pred_region
    _
  $region29: #{_lambda_.6} parent=0 // pred_fallthru
    _

// kernel: _lambda_.7
$region0: #{_lambda_.7}
  #allocation0 [shape = 'u32[]', space=smem, size = 0x4, offset = 0x4, fixed_abs, tag = 'smem constant byte address 0x4 - core index']
  #allocation1 [shape = 'u32[144,128]{1,0:T(1,128)}', space=vmem, size = 0x12000, scoped, tag = 'internal scratch']
  #allocation2 [shape = 'f32[128,128]{1,0:T(8,128)}', space=vmem, size = 0x10000, scoped, tag = 'scratch operand']
  %s0 = inlined_call_operand.vmem [shape: bf16[128,128], index: 0, kind: input, shape index: {}]
  %s1 = inlined_call_operand.vmem [shape: bf16[128,128], index: 1, kind: input, shape index: {}]
  %s2 = inlined_call_operand.vmem [shape: f32[1,128], index: 2, kind: input, shape index: {}]
  %s3 = inlined_call_operand.vmem [shape: f32[128,128], index: 3, kind: input, shape index: {}]
  %s4 = inlined_call_operand.hbm [shape: f32[128,128], index: 4, kind: output, shape index: {}]
  %s5 = sld [smem:[#allocation0]]
  $region34: #{_lambda_.7} parent=0
    _
  %s7 = ssub.s32 1, %s5
  %s8 = scalar_select 0, %s7, %s5
  $region1: #{_lambda_.7} parent=0
    #allocation3 [shape = 'u8[65536]{0}', space=vmem, size = 0x10000, scoped, tag = 'output window, operand 0, single buffered']
    #allocation4 [shape = 's32[1]{0}', space=sflag, size = 0x4, scoped, tag = 'scoped memory for _lambda_.7']
    %9 = vsyncpa [#allocation4], 0
    // Predicated region
    $region2: #{_lambda_.7} parent=1 // pred_check
      _
    $region3: #{_lambda_.7} parent=1 // pred_check_branch
      %11 = sbr.rel (0) target = $region5
    $region4: #{_lambda_.7} parent=1 // pred_region
      _
    $region5: #{_lambda_.7} parent=1 // pred_fallthru
      _
    // Predicated region
    $region6: #{_lambda_.7} parent=1 // pred_check
      _
    $region7: #{_lambda_.7} parent=1 // pred_check_branch
      %13 = sbr.rel (0) target = $region9
    $region8: #{_lambda_.7} parent=1 // pred_region
      _
    $region9: #{_lambda_.7} parent=1 // pred_fallthru
      _
    // Predicated region
    $region10: #{_lambda_.7} parent=1 // pred_check
      _
    $region11: #{_lambda_.7} parent=1 // pred_check_branch
      %15 = sbr.rel (0) target = $region13
    $region12: #{_lambda_.7} parent=1 // pred_region
      _
    $region13: #{_lambda_.7} parent=1 // pred_fallthru
      _
    // Predicated region
    $region14: #{_lambda_.7} parent=1 // pred_check
      _
    $region15: #{_lambda_.7} parent=1 // pred_check_branch
      %17 = sbr.rel (0) target = $region17
    $region16: #{_lambda_.7} parent=1 // pred_region
      _
    $region17: #{_lambda_.7} parent=1 // pred_fallthru
      _
    %p19 = scmp.eq.s32.totalorder 0, 0
    // Predicated region
    $region18: #{_lambda_.7} parent=1 // pred_check
      %p20 = pneg %p19
    $region19: #{_lambda_.7} parent=1 // pred_check_branch
      %22 = sbr.rel (%p20) target = $region21
    $region20: #{_lambda_.7} parent=1 // pred_region
      %23 = vst [vmem:[#allocation2] sm:$0xff] 0.0
      %24 = vst [vmem:[#allocation2 + $0x8] sm:$0xff] 0.0
      %25 = vst [vmem:[#allocation2 + $0x10] sm:$0xff] 0.0
      %26 = vst [vmem:[#allocation2 + $0x18] sm:$0xff] 0.0
      %27 = vst [vmem:[#allocation2 + $0x20] sm:$0xff] 0.0
      %28 = vst [vmem:[#allocation2 + $0x28] sm:$0xff] 0.0
      %29 = vst [vmem:[#allocation2 + $0x30] sm:$0xff] 0.0
      %30 = vst [vmem:[#allocation2 + $0x38] sm:$0xff] 0.0
      %31 = vst [vmem:[#allocation2 + $0x40] sm:$0xff] 0.0
      %32 = vst [vmem:[#allocation2 + $0x48] sm:$0xff] 0.0
      %33 = vst [vmem:[#allocation2 + $0x50] sm:$0xff] 0.0
      %34 = vst [vmem:[#allocation2 + $0x58] sm:$0xff] 0.0
      %35 = vst [vmem:[#allocation2 + $0x60] sm:$0xff] 0.0
      %36 = vst [vmem:[#allocation2 + $0x68] sm:$0xff] 0.0
      %37 = vst [vmem:[#allocation2 + $0x70] sm:$0xff] 0.0
      %38 = vst [vmem:[#allocation2 + $0x78] sm:$0xff] 0.0
    $region21: #{_lambda_.7} parent=1 // pred_fallthru
      _
    %v39 = vld [vmem:[#allocation2] sm:$0xff]
    %v40 = vld [vmem:[#allocation2 + $0x8] sm:$0xff]
    %v41 = vld [vmem:[#allocation2 + $0x10] sm:$0xff]
    %v42 = vld [vmem:[#allocation2 + $0x18] sm:$0xff]
    %v43 = vld [vmem:[#allocation2 + $0x20] sm:$0xff]
    %v44 = vld [vmem:[#allocation2 + $0x28] sm:$0xff]
    %v45 = vld [vmem:[#allocation2 + $0x30] sm:$0xff]
    %v46 = vld [vmem:[#allocation2 + $0x38] sm:$0xff]
    %v47 = vld [vmem:[#allocation2 + $0x40] sm:$0xff]
    %v48 = vld [vmem:[#allocation2 + $0x48] sm:$0xff]
    %v49 = vld [vmem:[#allocation2 + $0x50] sm:$0xff]
    %v50 = vld [vmem:[#allocation2 + $0x58] sm:$0xff]
    %v51 = vld [vmem:[#allocation2 + $0x60] sm:$0xff]
    %v52 = vld [vmem:[#allocation2 + $0x68] sm:$0xff]
    %v53 = vld [vmem:[#allocation2 + $0x70] sm:$0xff]
    %v54 = vld [vmem:[#allocation2 + $0x78] sm:$0xff]
    %v55 = vld [vmem:[%s0] sm:$0xf]
    %v56 = vld [vmem:[%s0 + $0x4] sm:$0xf]
    %v57 = vld [vmem:[%s0 + $0x8] sm:$0xf]
    %v58 = vld [vmem:[%s0 + $0xc] sm:$0xf]
    %v59 = vld [vmem:[%s0 + $0x10] sm:$0xf]
    %v60 = vld [vmem:[%s0 + $0x14] sm:$0xf]
    %v61 = vld [vmem:[%s0 + $0x18] sm:$0xf]
    %v62 = vld [vmem:[%s0 + $0x1c] sm:$0xf]
    %v63 = vld [vmem:[%s0 + $0x20] sm:$0xf]
    %v64 = vld [vmem:[%s0 + $0x24] sm:$0xf]
    %v65 = vld [vmem:[%s0 + $0x28] sm:$0xf]
    %v66 = vld [vmem:[%s0 + $0x2c] sm:$0xf]
    %v67 = vld [vmem:[%s0 + $0x30] sm:$0xf]
    %v68 = vld [vmem:[%s0 + $0x34] sm:$0xf]
    %v69 = vld [vmem:[%s0 + $0x38] sm:$0xf]
    %v70 = vld [vmem:[%s0 + $0x3c] sm:$0xf]
    %v71 = vld [vmem:[%s1] sm:$0xf]
    %v72 = vld [vmem:[%s1 + $0x4] sm:$0xf]
    %v73 = vld [vmem:[%s1 + $0x8] sm:$0xf]
    %v74 = vld [vmem:[%s1 + $0xc] sm:$0xf]
    %v75 = vld [vmem:[%s1 + $0x10] sm:$0xf]
    %v76 = vld [vmem:[%s1 + $0x14] sm:$0xf]
    %v77 = vld [vmem:[%s1 + $0x18] sm:$0xf]
    %v78 = vld [vmem:[%s1 + $0x1c] sm:$0xf]
    %v79 = vld [vmem:[%s1 + $0x20] sm:$0xf]
    %v80 = vld [vmem:[%s1 + $0x24] sm:$0xf]
    %v81 = vld [vmem:[%s1 + $0x28] sm:$0xf]
    %v82 = vld [vmem:[%s1 + $0x2c] sm:$0xf]
    %v83 = vld [vmem:[%s1 + $0x30] sm:$0xf]
    %v84 = vld [vmem:[%s1 + $0x34] sm:$0xf]
    %v85 = vld [vmem:[%s1 + $0x38] sm:$0xf]
    %v86 = vld [vmem:[%s1 + $0x3c] sm:$0xf]
    %v103 = vunpack.c.l.b16 %v55
    %v104 = vunpack.c.l.b16 %v56
    %v105 = vunpack.c.l.b16 %v57
    %v106 = vunpack.c.l.b16 %v58
    %v107 = vunpack.c.l.b16 %v59
    %v108 = vunpack.c.l.b16 %v60
    %v109 = vunpack.c.l.b16 %v61
    %v110 = vunpack.c.l.b16 %v62
    %v111 = vunpack.c.l.b16 %v63
    %v112 = vunpack.c.l.b16 %v64
    %v113 = vunpack.c.l.b16 %v65
    %v114 = vunpack.c.l.b16 %v66
    %v115 = vunpack.c.l.b16 %v67
    %v116 = vunpack.c.l.b16 %v68
    %v117 = vunpack.c.l.b16 %v69
    %v118 = vunpack.c.l.b16 %v70
    %v119 = vpack.c.b16 %v104, %v103
    %v120 = vpack.c.b16 %v106, %v105
    %v121 = vpack.c.b16 %v108, %v107
    %v122 = vpack.c.b16 %v110, %v109
    %v123 = vpack.c.b16 %v112, %v111
    %v124 = vpack.c.b16 %v114, %v113
    %v125 = vpack.c.b16 %v116, %v115
    %v126 = vpack.c.b16 %v118, %v117
    %v151 = vunpack.c.l.b16 %v71
    %v152 = vunpack.c.l.b16 %v72
    %v153 = vunpack.c.l.b16 %v73
    %v154 = vunpack.c.l.b16 %v74
    %v155 = vunpack.c.l.b16 %v75
    %v156 = vunpack.c.l.b16 %v76
    %v157 = vunpack.c.l.b16 %v77
    %v158 = vunpack.c.l.b16 %v78
    %v159 = vunpack.c.l.b16 %v79
    %v160 = vunpack.c.l.b16 %v80
    %v161 = vunpack.c.l.b16 %v81
    %v162 = vunpack.c.l.b16 %v82
    %v163 = vunpack.c.l.b16 %v83
    %v164 = vunpack.c.l.b16 %v84
    %v165 = vunpack.c.l.b16 %v85
    %v166 = vunpack.c.l.b16 %v86
    %v167 = vpack.c.b16 %v152, %v151
    %v168 = vpack.c.b16 %v154, %v153
    %v169 = vpack.c.b16 %v156, %v155
    %v170 = vpack.c.b16 %v158, %v157
    %v171 = vpack.c.b16 %v160, %v159
    %v172 = vpack.c.b16 %v162, %v161
    %v173 = vpack.c.b16 %v164, %v163
    %v174 = vpack.c.b16 %v166, %v165
    %183 = vmatprep.subr.bf16.mxu0 0
    %184 = vmatpush1.bf16.msra.mxu0 %v167
    %185 = vmatprep.subr.bf16.mxu0 0
    %186 = vmatpush1.bf16.msra.mxu0 %v168
    %187 = vmatprep.subr.bf16.mxu0 0
    %188 = vmatpush1.bf16.msra.mxu0 %v169
    %189 = vmatprep.subr.bf16.mxu0 0
    %190 = vmatpush1.bf16.msra.mxu0 %v170
    %191 = vmatprep.subr.bf16.mxu0 0
    %192 = vmatpush1.bf16.msra.mxu0 %v171
    %193 = vmatprep.subr.bf16.mxu0 0
    %194 = vmatpush1.bf16.msra.mxu0 %v172
    %195 = vmatprep.subr.bf16.mxu0 0
    %196 = vmatpush1.bf16.msra.mxu0 %v173
    %197 = vmatprep.subr.bf16.mxu0 0
    %198 = vmatpush1.bf16.msra.mxu0 %v174
    %199 = vmatprep.subr.bf16.mxu0 0
    %200 = vmatpush1.bf16.msra.mxu0 0
    %201 = vmatprep.subr.bf16.mxu0 0
    %202 = vmatpush1.bf16.msra.mxu0 0
    %203 = vmatprep.subr.bf16.mxu0 0
    %204 = vmatpush1.bf16.msra.mxu0 0
    %205 = vmatprep.subr.bf16.mxu0 0
    %206 = vmatpush1.bf16.msra.mxu0 0
    %207 = vmatprep.subr.bf16.mxu0 0
    %208 = vmatpush1.bf16.msra.mxu0 0
    %209 = vmatprep.subr.bf16.mxu0 0
    %210 = vmatpush1.bf16.msra.mxu0 0
    %211 = vmatprep.subr.bf16.mxu0 0
    %212 = vmatpush1.bf16.msra.mxu0 0
    %213 = vmatprep.subr.bf16.mxu0 0
    %214 = vmatpush1.bf16.msra.mxu0 0
    %215 = vmatprep.mubr.bf16.mxu0 0
    %216 = vmatmul.mubr.bf16.gmra.mrb[0].mxu0 %v119
    %v217 = vpop.f32.mrb[0].mxu0
    %v218 = vadd.f32 0.0, %v217
    %v219 = vpop.f32.mrb[0].mxu0
    %v220 = vpop.f32.mrb[0].mxu0
    %v221 = vadd.f32 0.0, %v220
    %v222 = vpop.f32.mrb[0].mxu0
    %223 = vmatprep.mubr.bf16.mxu0 0
    %224 = vmatmul.mubr.bf16.gmra.mrb[0].mxu0 %v120
    %v225 = vpop.f32.mrb[0].mxu0
    %v226 = vadd.f32 0.0, %v225
    %v227 = vpop.f32.mrb[0].mxu0
    %v228 = vpop.f32.mrb[0].mxu0
    %v229 = vadd.f32 0.0, %v228
    %v230 = vpop.f32.mrb[0].mxu0
    %231 = vmatprep.mubr.bf16.mxu0 0
    %232 = vmatmul.mubr.bf16.gmra.mrb[0].mxu0 %v121
    %v233 = vpop.f32.mrb[0].mxu0
    %v234 = vadd.f32 0.0, %v233
    %v235 = vpop.f32.mrb[0].mxu0
    %v236 = vpop.f32.mrb[0].mxu0
    %v237 = vadd.f32 0.0, %v236
    %v238 = vpop.f32.mrb[0].mxu0
    %239 = vmatprep.mubr.bf16.mxu0 0
    %240 = vmatmul.mubr.bf16.gmra.mrb[0].mxu0 %v122
    %v241 = vpop.f32.mrb[0].mxu0
    %v242 = vadd.f32 0.0, %v241
    %v243 = vpop.f32.mrb[0].mxu0
    %v244 = vpop.f32.mrb[0].mxu0
    %v245 = vadd.f32 0.0, %v244
    %v246 = vpop.f32.mrb[0].mxu0
    %247 = vmatprep.mubr.bf16.mxu0 0
    %248 = vmatmul.mubr.bf16.gmra.mrb[0].mxu0 %v123
    %v249 = vpop.f32.mrb[0].mxu0
    %v250 = vadd.f32 0.0, %v249
    %v251 = vpop.f32.mrb[0].mxu0
    %v252 = vpop.f32.mrb[0].mxu0
    %v253 = vadd.f32 0.0, %v252
    %v254 = vpop.f32.mrb[0].mxu0
    %255 = vmatprep.mubr.bf16.mxu0 0
    %256 = vmatmul.mubr.bf16.gmra.mrb[0].mxu0 %v124
    %v257 = vpop.f32.mrb[0].mxu0
    %v258 = vadd.f32 0.0, %v257
    %v259 = vpop.f32.mrb[0].mxu0
    %v260 = vpop.f32.mrb[0].mxu0
    %v261 = vadd.f32 0.0, %v260
    %v262 = vpop.f32.mrb[0].mxu0
    %263 = vmatprep.mubr.bf16.mxu0 0
    %264 = vmatmul.mubr.bf16.gmra.mrb[0].mxu0 %v125
    %v265 = vpop.f32.mrb[0].mxu0
    %v266 = vadd.f32 0.0, %v265
    %v267 = vpop.f32.mrb[0].mxu0
    %v268 = vpop.f32.mrb[0].mxu0
    %v269 = vadd.f32 0.0, %v268
    %v270 = vpop.f32.mrb[0].mxu0
    %271 = vmatprep.mubr.bf16.mxu0 0
    %272 = vmatmul.mubr.bf16.gmra.mrb[0].mxu0 %v126
    %v273 = vpop.f32.mrb[0].mxu0
    %v274 = vadd.f32 0.0, %v273
    %v275 = vpop.f32.mrb[0].mxu0
    %v276 = vpop.f32.mrb[0].mxu0
    %v277 = vadd.f32 0.0, %v276
    %v278 = vpop.f32.mrb[0].mxu0
    %279 = vdwg.mxu0
    %v280 = vadd.f32 %v39, %v218
    %v281 = vadd.f32 %v40, %v221
    %v282 = vadd.f32 %v41, %v226
    %v283 = vadd.f32 %v42, %v229
    %v284 = vadd.f32 %v43, %v234
    %v285 = vadd.f32 %v44, %v237
    %v286 = vadd.f32 %v45, %v242
    %v287 = vadd.f32 %v46, %v245
    %v288 = vadd.f32 %v47, %v250
    %v289 = vadd.f32 %v48, %v253
    %v290 = vadd.f32 %v49, %v258
    %v291 = vadd.f32 %v50, %v261
    %v292 = vadd.f32 %v51, %v266
    %v293 = vadd.f32 %v52, %v269
    %v294 = vadd.f32 %v53, %v274
    %v295 = vadd.f32 %v54, %v277
    %296 = vst [vmem:[#allocation2] sm:$0xff] %v280
    %297 = vst [vmem:[#allocation2 + $0x8] sm:$0xff] %v281
    %298 = vst [vmem:[#allocation2 + $0x10] sm:$0xff] %v282
    %299 = vst [vmem:[#allocation2 + $0x18] sm:$0xff] %v283
    %300 = vst [vmem:[#allocation2 + $0x20] sm:$0xff] %v284
    %301 = vst [vmem:[#allocation2 + $0x28] sm:$0xff] %v285
    %302 = vst [vmem:[#allocation2 + $0x30] sm:$0xff] %v286
    %303 = vst [vmem:[#allocation2 + $0x38] sm:$0xff] %v287
    %304 = vst [vmem:[#allocation2 + $0x40] sm:$0xff] %v288
    %305 = vst [vmem:[#allocation2 + $0x48] sm:$0xff] %v289
    %306 = vst [vmem:[#allocation2 + $0x50] sm:$0xff] %v290
    %307 = vst [vmem:[#allocation2 + $0x58] sm:$0xff] %v291
    %308 = vst [vmem:[#allocation2 + $0x60] sm:$0xff] %v292
    %309 = vst [vmem:[#allocation2 + $0x68] sm:$0xff] %v293
    %310 = vst [vmem:[#allocation2 + $0x70] sm:$0xff] %v294
    %311 = vst [vmem:[#allocation2 + $0x78] sm:$0xff] %v295
    // Predicated region
    $region22: #{_lambda_.7} parent=1 // pred_check
      %p312 = pneg %p19
    $region23: #{_lambda_.7} parent=1 // pred_check_branch
      %314 = sbr.rel (%p312) target = $region25
    $region24: #{_lambda_.7} parent=1 // pred_region
      %v315 = vld [vmem:[#allocation2] sm:$0xff]
      %v316 = vld [vmem:[#allocation2 + $0x8] sm:$0xff]
      %v317 = vld [vmem:[#allocation2 + $0x10] sm:$0xff]
      %v318 = vld [vmem:[#allocation2 + $0x18] sm:$0xff]
      %v319 = vld [vmem:[#allocation2 + $0x20] sm:$0xff]
      %v320 = vld [vmem:[#allocation2 + $0x28] sm:$0xff]
      %v321 = vld [vmem:[#allocation2 + $0x30] sm:$0xff]
      %v322 = vld [vmem:[#allocation2 + $0x38] sm:$0xff]
      %v323 = vld [vmem:[#allocation2 + $0x40] sm:$0xff]
      %v324 = vld [vmem:[#allocation2 + $0x48] sm:$0xff]
      %v325 = vld [vmem:[#allocation2 + $0x50] sm:$0xff]
      %v326 = vld [vmem:[#allocation2 + $0x58] sm:$0xff]
      %v327 = vld [vmem:[#allocation2 + $0x60] sm:$0xff]
      %v328 = vld [vmem:[#allocation2 + $0x68] sm:$0xff]
      %v329 = vld [vmem:[#allocation2 + $0x70] sm:$0xff]
      %v330 = vld [vmem:[#allocation2 + $0x78] sm:$0xff]
      %v331 = vld [vmem:[%s2] sm:$0x1]
      %v333 = vlaneseq
      %v334 = vshrl.u32 %v333, 7
      %v335 = vsub.s32 0, %v334
      %v336 = vrot.slane %v331, %v335
      %v338 = vadd.f32 %v315, %v336
      %v339 = vadd.f32 %v316, %v336
      %v340 = vadd.f32 %v317, %v336
      %v341 = vadd.f32 %v318, %v336
      %v342 = vadd.f32 %v319, %v336
      %v343 = vadd.f32 %v320, %v336
      %v344 = vadd.f32 %v321, %v336
      %v345 = vadd.f32 %v322, %v336
      %v346 = vadd.f32 %v323, %v336
      %v347 = vadd.f32 %v324, %v336
      %v348 = vadd.f32 %v325, %v336
      %v349 = vadd.f32 %v326, %v336
      %v350 = vadd.f32 %v327, %v336
      %v351 = vadd.f32 %v328, %v336
      %v352 = vadd.f32 %v329, %v336
      %v353 = vadd.f32 %v330, %v336
      %v354 = vld [vmem:[%s3] sm:$0xff]
      %v355 = vld [vmem:[%s3 + $0x8] sm:$0xff]
      %v356 = vld [vmem:[%s3 + $0x10] sm:$0xff]
      %v357 = vld [vmem:[%s3 + $0x18] sm:$0xff]
      %v358 = vld [vmem:[%s3 + $0x20] sm:$0xff]
      %v359 = vld [vmem:[%s3 + $0x28] sm:$0xff]
      %v360 = vld [vmem:[%s3 + $0x30] sm:$0xff]
      %v361 = vld [vmem:[%s3 + $0x38] sm:$0xff]
      %v362 = vld [vmem:[%s3 + $0x40] sm:$0xff]
      %v363 = vld [vmem:[%s3 + $0x48] sm:$0xff]
      %v364 = vld [vmem:[%s3 + $0x50] sm:$0xff]
      %v365 = vld [vmem:[%s3 + $0x58] sm:$0xff]
      %v366 = vld [vmem:[%s3 + $0x60] sm:$0xff]
      %v367 = vld [vmem:[%s3 + $0x68] sm:$0xff]
      %v368 = vld [vmem:[%s3 + $0x70] sm:$0xff]
      %v369 = vld [vmem:[%s3 + $0x78] sm:$0xff]
      %v370 = vadd.f32 %v338, %v354
      %v371 = vadd.f32 %v339, %v355
      %v372 = vadd.f32 %v340, %v356
      %v373 = vadd.f32 %v341, %v357
      %v374 = vadd.f32 %v342, %v358
      %v375 = vadd.f32 %v343, %v359
      %v376 = vadd.f32 %v344, %v360
      %v377 = vadd.f32 %v345, %v361
      %v378 = vadd.f32 %v346, %v362
      %v379 = vadd.f32 %v347, %v363
      %v380 = vadd.f32 %v348, %v364
      %v381 = vadd.f32 %v349, %v365
      %v382 = vadd.f32 %v350, %v366
      %v383 = vadd.f32 %v351, %v367
      %v384 = vadd.f32 %v352, %v368
      %v385 = vadd.f32 %v353, %v369
      %v386 = vmax.f32 %v370, 0.0
      %v387 = vmax.f32 %v371, 0.0
      %v388 = vmax.f32 %v372, 0.0
      %v389 = vmax.f32 %v373, 0.0
      %v390 = vmax.f32 %v374, 0.0
      %v391 = vmax.f32 %v375, 0.0
      %v392 = vmax.f32 %v376, 0.0
      %v393 = vmax.f32 %v377, 0.0
      %v394 = vmax.f32 %v378, 0.0
      %v395 = vmax.f32 %v379, 0.0
      %v396 = vmax.f32 %v380, 0.0
      %v397 = vmax.f32 %v381, 0.0
      %v398 = vmax.f32 %v382, 0.0
      %v399 = vmax.f32 %v383, 0.0
      %v400 = vmax.f32 %v384, 0.0
      %v401 = vmax.f32 %v385, 0.0
      %402 = vst [vmem:[#allocation3] sm:$0xff] %v386
      %403 = vst [vmem:[#allocation3 + $0x8] sm:$0xff] %v387
      %404 = vst [vmem:[#allocation3 + $0x10] sm:$0xff] %v388
      %405 = vst [vmem:[#allocation3 + $0x18] sm:$0xff] %v389
      %406 = vst [vmem:[#allocation3 + $0x20] sm:$0xff] %v390
      %407 = vst [vmem:[#allocation3 + $0x28] sm:$0xff] %v391
      %408 = vst [vmem:[#allocation3 + $0x30] sm:$0xff] %v392
      %409 = vst [vmem:[#allocation3 + $0x38] sm:$0xff] %v393
      %410 = vst [vmem:[#allocation3 + $0x40] sm:$0xff] %v394
      %411 = vst [vmem:[#allocation3 + $0x48] sm:$0xff] %v395
      %412 = vst [vmem:[#allocation3 + $0x50] sm:$0xff] %v396
      %413 = vst [vmem:[#allocation3 + $0x58] sm:$0xff] %v397
      %414 = vst [vmem:[#allocation3 + $0x60] sm:$0xff] %v398
      %415 = vst [vmem:[#allocation3 + $0x68] sm:$0xff] %v399
      %416 = vst [vmem:[#allocation3 + $0x70] sm:$0xff] %v400
      %417 = vst [vmem:[#allocation3 + $0x78] sm:$0xff] %v401
    $region25: #{_lambda_.7} parent=1 // pred_fallthru
      _
    // Predicated region
    $region26: #{_lambda_.7} parent=1 // pred_check
      _
    $region27: #{_lambda_.7} parent=1 // pred_check_branch
      %419 = sbr.rel (0) target = $region29
    $region28: #{_lambda_.7} parent=1 // pred_region
      %s421 = ssub.s32 2048, 2048
      %422 = vsyncadd [#allocation4], %s421
      %s423 = sshll.u32 [#allocation3], 4
      %s424 = int_to_ptr.vmem [resolvable:$true] %s423
      %429 = dma.vmem_to_hbm [thread:$0]  %s424, 2048, %s4, [#allocation4], 128, 128, 8
    $region29: #{_lambda_.7} parent=1 // pred_fallthru
      _
    // Predicated region
    $region30: #{_lambda_.7} parent=1 // pred_check
      _
    $region31: #{_lambda_.7} parent=1 // pred_check_branch
      %431 = sbr.rel (0) target = $region33
    $region32: #{_lambda_.7} parent=1 // pred_region
      %432 = dma.done [#allocation4], 2048
    $region33: #{_lambda_.7} parent=1 // pred_fallthru
      _
    %433 = vsyncpa [#allocation4], 1

// kernel: _lambda_.4
$region0: #{_lambda_.4}
  #allocation0 [shape = 'u32[]', space=smem, size = 0x4, offset = 0x4, fixed_abs, tag = 'smem constant byte address 0x4 - core index']
  #allocation1 [shape = 'u32[144,128]{1,0:T(1,128)}', space=vmem, size = 0x12000, scoped, tag = 'internal scratch']
  #allocation2 [shape = 'f32[128,128]{1,0:T(8,128)}', space=vmem, size = 0x10000, scoped, tag = 'scratch operand']
  %s0 = inlined_call_operand.vmem [shape: bf16[128,128], index: 0, kind: input, shape index: {}]
  %s1 = inlined_call_operand.vmem [shape: bf16[128,128], index: 1, kind: input, shape index: {}]
  %s2 = inlined_call_operand.vmem [shape: f32[1,128], index: 2, kind: input, shape index: {}]
  %s3 = inlined_call_operand.vmem [shape: f32[128,128], index: 3, kind: output, shape index: {}]
  %s4 = sld [smem:[#allocation0]]
  $region30: #{_lambda_.4} parent=0
    _
  %s6 = ssub.s32 1, %s4
  %s7 = scalar_select 0, %s6, %s4
  // Predicated region
  $region2: #{_lambda_.4} parent=0 // pred_check
    _
  $region3: #{_lambda_.4} parent=0 // pred_check_branch
    %9 = sbr.rel (0) target = $region5
  $region4: #{_lambda_.4} parent=0 // pred_region
    _
  $region5: #{_lambda_.4} parent=0 // pred_fallthru
    _
  // Predicated region
  $region6: #{_lambda_.4} parent=0 // pred_check
    _
  $region7: #{_lambda_.4} parent=0 // pred_check_branch
    %11 = sbr.rel (0) target = $region9
  $region8: #{_lambda_.4} parent=0 // pred_region
    _
  $region9: #{_lambda_.4} parent=0 // pred_fallthru
    _
  // Predicated region
  $region10: #{_lambda_.4} parent=0 // pred_check
    _
  $region11: #{_lambda_.4} parent=0 // pred_check_branch
    %13 = sbr.rel (0) target = $region13
  $region12: #{_lambda_.4} parent=0 // pred_region
    _
  $region13: #{_lambda_.4} parent=0 // pred_fallthru
    _
  %p15 = scmp.eq.s32.totalorder 0, 0
  // Predicated region
  $region14: #{_lambda_.4} parent=0 // pred_check
    %p16 = pneg %p15
  $region15: #{_lambda_.4} parent=0 // pred_check_branch
    %18 = sbr.rel (%p16) target = $region17
  $region16: #{_lambda_.4} parent=0 // pred_region
    %19 = vst [vmem:[#allocation2] sm:$0xff] 0.0
    %20 = vst [vmem:[#allocation2 + $0x8] sm:$0xff] 0.0
    %21 = vst [vmem:[#allocation2 + $0x10] sm:$0xff] 0.0
    %22 = vst [vmem:[#allocation2 + $0x18] sm:$0xff] 0.0
    %23 = vst [vmem:[#allocation2 + $0x20] sm:$0xff] 0.0
    %24 = vst [vmem:[#allocation2 + $0x28] sm:$0xff] 0.0
    %25 = vst [vmem:[#allocation2 + $0x30] sm:$0xff] 0.0
    %26 = vst [vmem:[#allocation2 + $0x38] sm:$0xff] 0.0
    %27 = vst [vmem:[#allocation2 + $0x40] sm:$0xff] 0.0
    %28 = vst [vmem:[#allocation2 + $0x48] sm:$0xff] 0.0
    %29 = vst [vmem:[#allocation2 + $0x50] sm:$0xff] 0.0
    %30 = vst [vmem:[#allocation2 + $0x58] sm:$0xff] 0.0
    %31 = vst [vmem:[#allocation2 + $0x60] sm:$0xff] 0.0
    %32 = vst [vmem:[#allocation2 + $0x68] sm:$0xff] 0.0
    %33 = vst [vmem:[#allocation2 + $0x70] sm:$0xff] 0.0
    %34 = vst [vmem:[#allocation2 + $0x78] sm:$0xff] 0.0
  $region17: #{_lambda_.4} parent=0 // pred_fallthru
    _
  %v35 = vld [vmem:[#allocation2] sm:$0xff]
  %v36 = vld [vmem:[#allocation2 + $0x8] sm:$0xff]
  %v37 = vld [vmem:[#allocation2 + $0x10] sm:$0xff]
  %v38 = vld [vmem:[#allocation2 + $0x18] sm:$0xff]
  %v39 = vld [vmem:[#allocation2 + $0x20] sm:$0xff]
  %v40 = vld [vmem:[#allocation2 + $0x28] sm:$0xff]
  %v41 = vld [vmem:[#allocation2 + $0x30] sm:$0xff]
  %v42 = vld [vmem:[#allocation2 + $0x38] sm:$0xff]
  %v43 = vld [vmem:[#allocation2 + $0x40] sm:$0xff]
  %v44 = vld [vmem:[#allocation2 + $0x48] sm:$0xff]
  %v45 = vld [vmem:[#allocation2 + $0x50] sm:$0xff]
  %v46 = vld [vmem:[#allocation2 + $0x58] sm:$0xff]
  %v47 = vld [vmem:[#allocation2 + $0x60] sm:$0xff]
  %v48 = vld [vmem:[#allocation2 + $0x68] sm:$0xff]
  %v49 = vld [vmem:[#allocation2 + $0x70] sm:$0xff]
  %v50 = vld [vmem:[#allocation2 + $0x78] sm:$0xff]
  %v51 = vld [vmem:[%s0] sm:$0xf]
  %v52 = vld [vmem:[%s0 + $0x4] sm:$0xf]
  %v53 = vld [vmem:[%s0 + $0x8] sm:$0xf]
  %v54 = vld [vmem:[%s0 + $0xc] sm:$0xf]
  %v55 = vld [vmem:[%s0 + $0x10] sm:$0xf]
  %v56 = vld [vmem:[%s0 + $0x14] sm:$0xf]
  %v57 = vld [vmem:[%s0 + $0x18] sm:$0xf]
  %v58 = vld [vmem:[%s0 + $0x1c] sm:$0xf]
  %v59 = vld [vmem:[%s0 + $0x20] sm:$0xf]
  %v60 = vld [vmem:[%s0 + $0x24] sm:$0xf]
  %v61 = vld [vmem:[%s0 + $0x28] sm:$0xf]
  %v62 = vld [vmem:[%s0 + $0x2c] sm:$0xf]
  %v63 = vld [vmem:[%s0 + $0x30] sm:$0xf]
  %v64 = vld [vmem:[%s0 + $0x34] sm:$0xf]
  %v65 = vld [vmem:[%s0 + $0x38] sm:$0xf]
  %v66 = vld [vmem:[%s0 + $0x3c] sm:$0xf]
  %v67 = vld [vmem:[%s1] sm:$0xf]
  %v68 = vld [vmem:[%s1 + $0x4] sm:$0xf]
  %v69 = vld [vmem:[%s1 + $0x8] sm:$0xf]
  %v70 = vld [vmem:[%s1 + $0xc] sm:$0xf]
  %v71 = vld [vmem:[%s1 + $0x10] sm:$0xf]
  %v72 = vld [vmem:[%s1 + $0x14] sm:$0xf]
  %v73 = vld [vmem:[%s1 + $0x18] sm:$0xf]
  %v74 = vld [vmem:[%s1 + $0x1c] sm:$0xf]
  %v75 = vld [vmem:[%s1 + $0x20] sm:$0xf]
  %v76 = vld [vmem:[%s1 + $0x24] sm:$0xf]
  %v77 = vld [vmem:[%s1 + $0x28] sm:$0xf]
  %v78 = vld [vmem:[%s1 + $0x2c] sm:$0xf]
  %v79 = vld [vmem:[%s1 + $0x30] sm:$0xf]
  %v80 = vld [vmem:[%s1 + $0x34] sm:$0xf]
  %v81 = vld [vmem:[%s1 + $0x38] sm:$0xf]
  %v82 = vld [vmem:[%s1 + $0x3c] sm:$0xf]
  %v99 = vunpack.c.l.b16 %v51
  %v100 = vunpack.c.l.b16 %v52
  %v101 = vunpack.c.l.b16 %v53
  %v102 = vunpack.c.l.b16 %v54
  %v103 = vunpack.c.l.b16 %v55
  %v104 = vunpack.c.l.b16 %v56
  %v105 = vunpack.c.l.b16 %v57
  %v106 = vunpack.c.l.b16 %v58
  %v107 = vunpack.c.l.b16 %v59
  %v108 = vunpack.c.l.b16 %v60
  %v109 = vunpack.c.l.b16 %v61
  %v110 = vunpack.c.l.b16 %v62
  %v111 = vunpack.c.l.b16 %v63
  %v112 = vunpack.c.l.b16 %v64
  %v113 = vunpack.c.l.b16 %v65
  %v114 = vunpack.c.l.b16 %v66
  %v115 = vpack.c.b16 %v100, %v99
  %v116 = vpack.c.b16 %v102, %v101
  %v117 = vpack.c.b16 %v104, %v103
  %v118 = vpack.c.b16 %v106, %v105
  %v119 = vpack.c.b16 %v108, %v107
  %v120 = vpack.c.b16 %v110, %v109
  %v121 = vpack.c.b16 %v112, %v111
  %v122 = vpack.c.b16 %v114, %v113
  %v147 = vunpack.c.l.b16 %v67
  %v148 = vunpack.c.l.b16 %v68
  %v149 = vunpack.c.l.b16 %v69
  %v150 = vunpack.c.l.b16 %v70
  %v151 = vunpack.c.l.b16 %v71
  %v152 = vunpack.c.l.b16 %v72
  %v153 = vunpack.c.l.b16 %v73
  %v154 = vunpack.c.l.b16 %v74
  %v155 = vunpack.c.l.b16 %v75
  %v156 = vunpack.c.l.b16 %v76
  %v157 = vunpack.c.l.b16 %v77
  %v158 = vunpack.c.l.b16 %v78
  %v159 = vunpack.c.l.b16 %v79
  %v160 = vunpack.c.l.b16 %v80
  %v161 = vunpack.c.l.b16 %v81
  %v162 = vunpack.c.l.b16 %v82
  %v163 = vpack.c.b16 %v148, %v147
  %v164 = vpack.c.b16 %v150, %v149
  %v165 = vpack.c.b16 %v152, %v151
  %v166 = vpack.c.b16 %v154, %v153
  %v167 = vpack.c.b16 %v156, %v155
  %v168 = vpack.c.b16 %v158, %v157
  %v169 = vpack.c.b16 %v160, %v159
  %v170 = vpack.c.b16 %v162, %v161
  %179 = vmatprep.subr.bf16.mxu0 0
  %180 = vmatpush1.bf16.msra.mxu0 %v163
  %181 = vmatprep.subr.bf16.mxu0 0
  %182 = vmatpush1.bf16.msra.mxu0 %v164
  %183 = vmatprep.subr.bf16.mxu0 0
  %184 = vmatpush1.bf16.msra.mxu0 %v165
  %185 = vmatprep.subr.bf16.mxu0 0
  %186 = vmatpush1.bf16.msra.mxu0 %v166
  %187 = vmatprep.subr.bf16.mxu0 0
  %188 = vmatpush1.bf16.msra.mxu0 %v167
  %189 = vmatprep.subr.bf16.mxu0 0
  %190 = vmatpush1.bf16.msra.mxu0 %v168
  %191 = vmatprep.subr.bf16.mxu0 0
  %192 = vmatpush1.bf16.msra.mxu0 %v169
  %193 = vmatprep.subr.bf16.mxu0 0
  %194 = vmatpush1.bf16.msra.mxu0 %v170
  %195 = vmatprep.subr.bf16.mxu0 0
  %196 = vmatpush1.bf16.msra.mxu0 0
  %197 = vmatprep.subr.bf16.mxu0 0
  %198 = vmatpush1.bf16.msra.mxu0 0
  %199 = vmatprep.subr.bf16.mxu0 0
  %200 = vmatpush1.bf16.msra.mxu0 0
  %201 = vmatprep.subr.bf16.mxu0 0
  %202 = vmatpush1.bf16.msra.mxu0 0
  %203 = vmatprep.subr.bf16.mxu0 0
  %204 = vmatpush1.bf16.msra.mxu0 0
  %205 = vmatprep.subr.bf16.mxu0 0
  %206 = vmatpush1.bf16.msra.mxu0 0
  %207 = vmatprep.subr.bf16.mxu0 0
  %208 = vmatpush1.bf16.msra.mxu0 0
  %209 = vmatprep.subr.bf16.mxu0 0
  %210 = vmatpush1.bf16.msra.mxu0 0
  %211 = vmatprep.mubr.bf16.mxu0 0
  %212 = vmatmul.mubr.bf16.gmra.mrb[0].mxu0 %v115
  %v213 = vpop.f32.mrb[0].mxu0
  %v214 = vadd.f32 0.0, %v213
  %v215 = vpop.f32.mrb[0].mxu0
  %v216 = vpop.f32.mrb[0].mxu0
  %v217 = vadd.f32 0.0, %v216
  %v218 = vpop.f32.mrb[0].mxu0
  %219 = vmatprep.mubr.bf16.mxu0 0
  %220 = vmatmul.mubr.bf16.gmra.mrb[0].mxu0 %v116
  %v221 = vpop.f32.mrb[0].mxu0
  %v222 = vadd.f32 0.0, %v221
  %v223 = vpop.f32.mrb[0].mxu0
  %v224 = vpop.f32.mrb[0].mxu0
  %v225 = vadd.f32 0.0, %v224
  %v226 = vpop.f32.mrb[0].mxu0
  %227 = vmatprep.mubr.bf16.mxu0 0
  %228 = vmatmul.mubr.bf16.gmra.mrb[0].mxu0 %v117
  %v229 = vpop.f32.mrb[0].mxu0
  %v230 = vadd.f32 0.0, %v229
  %v231 = vpop.f32.mrb[0].mxu0
  %v232 = vpop.f32.mrb[0].mxu0
  %v233 = vadd.f32 0.0, %v232
  %v234 = vpop.f32.mrb[0].mxu0
  %235 = vmatprep.mubr.bf16.mxu0 0
  %236 = vmatmul.mubr.bf16.gmra.mrb[0].mxu0 %v118
  %v237 = vpop.f32.mrb[0].mxu0
  %v238 = vadd.f32 0.0, %v237
  %v239 = vpop.f32.mrb[0].mxu0
  %v240 = vpop.f32.mrb[0].mxu0
  %v241 = vadd.f32 0.0, %v240
  %v242 = vpop.f32.mrb[0].mxu0
  %243 = vmatprep.mubr.bf16.mxu0 0
  %244 = vmatmul.mubr.bf16.gmra.mrb[0].mxu0 %v119
  %v245 = vpop.f32.mrb[0].mxu0
  %v246 = vadd.f32 0.0, %v245
  %v247 = vpop.f32.mrb[0].mxu0
  %v248 = vpop.f32.mrb[0].mxu0
  %v249 = vadd.f32 0.0, %v248
  %v250 = vpop.f32.mrb[0].mxu0
  %251 = vmatprep.mubr.bf16.mxu0 0
  %252 = vmatmul.mubr.bf16.gmra.mrb[0].mxu0 %v120
  %v253 = vpop.f32.mrb[0].mxu0
  %v254 = vadd.f32 0.0, %v253
  %v255 = vpop.f32.mrb[0].mxu0
  %v256 = vpop.f32.mrb[0].mxu0
  %v257 = vadd.f32 0.0, %v256
  %v258 = vpop.f32.mrb[0].mxu0
  %259 = vmatprep.mubr.bf16.mxu0 0
  %260 = vmatmul.mubr.bf16.gmra.mrb[0].mxu0 %v121
  %v261 = vpop.f32.mrb[0].mxu0
  %v262 = vadd.f32 0.0, %v261
  %v263 = vpop.f32.mrb[0].mxu0
  %v264 = vpop.f32.mrb[0].mxu0
  %v265 = vadd.f32 0.0, %v264
  %v266 = vpop.f32.mrb[0].mxu0
  %267 = vmatprep.mubr.bf16.mxu0 0
  %268 = vmatmul.mubr.bf16.gmra.mrb[0].mxu0 %v122
  %v269 = vpop.f32.mrb[0].mxu0
  %v270 = vadd.f32 0.0, %v269
  %v271 = vpop.f32.mrb[0].mxu0
  %v272 = vpop.f32.mrb[0].mxu0
  %v273 = vadd.f32 0.0, %v272
  %v274 = vpop.f32.mrb[0].mxu0
  %275 = vdwg.mxu0
  %v276 = vadd.f32 %v35, %v214
  %v277 = vadd.f32 %v36, %v217
  %v278 = vadd.f32 %v37, %v222
  %v279 = vadd.f32 %v38, %v225
  %v280 = vadd.f32 %v39, %v230
  %v281 = vadd.f32 %v40, %v233
  %v282 = vadd.f32 %v41, %v238
  %v283 = vadd.f32 %v42, %v241
  %v284 = vadd.f32 %v43, %v246
  %v285 = vadd.f32 %v44, %v249
  %v286 = vadd.f32 %v45, %v254
  %v287 = vadd.f32 %v46, %v257
  %v288 = vadd.f32 %v47, %v262
  %v289 = vadd.f32 %v48, %v265
  %v290 = vadd.f32 %v49, %v270
  %v291 = vadd.f32 %v50, %v273
  %292 = vst [vmem:[#allocation2] sm:$0xff] %v276
  %293 = vst [vmem:[#allocation2 + $0x8] sm:$0xff] %v277
  %294 = vst [vmem:[#allocation2 + $0x10] sm:$0xff] %v278
  %295 = vst [vmem:[#allocation2 + $0x18] sm:$0xff] %v279
  %296 = vst [vmem:[#allocation2 + $0x20] sm:$0xff] %v280
  %297 = vst [vmem:[#allocation2 + $0x28] sm:$0xff] %v281
  %298 = vst [vmem:[#allocation2 + $0x30] sm:$0xff] %v282
  %299 = vst [vmem:[#allocation2 + $0x38] sm:$0xff] %v283
  %300 = vst [vmem:[#allocation2 + $0x40] sm:$0xff] %v284
  %301 = vst [vmem:[#allocation2 + $0x48] sm:$0xff] %v285
  %302 = vst [vmem:[#allocation2 + $0x50] sm:$0xff] %v286
  %303 = vst [vmem:[#allocation2 + $0x58] sm:$0xff] %v287
  %304 = vst [vmem:[#allocation2 + $0x60] sm:$0xff] %v288
  %305 = vst [vmem:[#allocation2 + $0x68] sm:$0xff] %v289
  %306 = vst [vmem:[#allocation2 + $0x70] sm:$0xff] %v290
  %307 = vst [vmem:[#allocation2 + $0x78] sm:$0xff] %v291
  // Predicated region
  $region18: #{_lambda_.4} parent=0 // pred_check
    %p308 = pneg %p15
  $region19: #{_lambda_.4} parent=0 // pred_check_branch
    %310 = sbr.rel (%p308) target = $region21
  $region20: #{_lambda_.4} parent=0 // pred_region
    %v311 = vld [vmem:[#allocation2] sm:$0xff]
    %v312 = vld [vmem:[#allocation2 + $0x8] sm:$0xff]
    %v313 = vld [vmem:[#allocation2 + $0x10] sm:$0xff]
    %v314 = vld [vmem:[#allocation2 + $0x18] sm:$0xff]
    %v315 = vld [vmem:[#allocation2 + $0x20] sm:$0xff]
    %v316 = vld [vmem:[#allocation2 + $0x28] sm:$0xff]
    %v317 = vld [vmem:[#allocation2 + $0x30] sm:$0xff]
    %v318 = vld [vmem:[#allocation2 + $0x38] sm:$0xff]
    %v319 = vld [vmem:[#allocation2 + $0x40] sm:$0xff]
    %v320 = vld [vmem:[#allocation2 + $0x48] sm:$0xff]
    %v321 = vld [vmem:[#allocation2 + $0x50] sm:$0xff]
    %v322 = vld [vmem:[#allocation2 + $0x58] sm:$0xff]
    %v323 = vld [vmem:[#allocation2 + $0x60] sm:$0xff]
    %v324 = vld [vmem:[#allocation2 + $0x68] sm:$0xff]
    %v325 = vld [vmem:[#allocation2 + $0x70] sm:$0xff]
    %v326 = vld [vmem:[#allocation2 + $0x78] sm:$0xff]
    %v327 = vld [vmem:[%s2] sm:$0x1]
    %v329 = vlaneseq
    %v330 = vshrl.u32 %v329, 7
    %v331 = vsub.s32 0, %v330
    %v332 = vrot.slane %v327, %v331
    %v334 = vadd.f32 %v311, %v332
    %v335 = vadd.f32 %v312, %v332
    %v336 = vadd.f32 %v313, %v332
    %v337 = vadd.f32 %v314, %v332
    %v338 = vadd.f32 %v315, %v332
    %v339 = vadd.f32 %v316, %v332
    %v340 = vadd.f32 %v317, %v332
    %v341 = vadd.f32 %v318, %v332
    %v342 = vadd.f32 %v319, %v332
    %v343 = vadd.f32 %v320, %v332
    %v344 = vadd.f32 %v321, %v332
    %v345 = vadd.f32 %v322, %v332
    %v346 = vadd.f32 %v323, %v332
    %v347 = vadd.f32 %v324, %v332
    %v348 = vadd.f32 %v325, %v332
    %v349 = vadd.f32 %v326, %v332
    %350 = vst [vmem:[%s3] sm:$0xff] %v334
    %351 = vst [vmem:[%s3 + $0x8] sm:$0xff] %v335
    %352 = vst [vmem:[%s3 + $0x10] sm:$0xff] %v336
    %353 = vst [vmem:[%s3 + $0x18] sm:$0xff] %v337
    %354 = vst [vmem:[%s3 + $0x20] sm:$0xff] %v338
    %355 = vst [vmem:[%s3 + $0x28] sm:$0xff] %v339
    %356 = vst [vmem:[%s3 + $0x30] sm:$0xff] %v340
    %357 = vst [vmem:[%s3 + $0x38] sm:$0xff] %v341
    %358 = vst [vmem:[%s3 + $0x40] sm:$0xff] %v342
    %359 = vst [vmem:[%s3 + $0x48] sm:$0xff] %v343
    %360 = vst [vmem:[%s3 + $0x50] sm:$0xff] %v344
    %361 = vst [vmem:[%s3 + $0x58] sm:$0xff] %v345
    %362 = vst [vmem:[%s3 + $0x60] sm:$0xff] %v346
    %363 = vst [vmem:[%s3 + $0x68] sm:$0xff] %v347
    %364 = vst [vmem:[%s3 + $0x70] sm:$0xff] %v348
    %365 = vst [vmem:[%s3 + $0x78] sm:$0xff] %v349
  $region21: #{_lambda_.4} parent=0 // pred_fallthru
    _
  // Predicated region
  $region22: #{_lambda_.4} parent=0 // pred_check
    _
  $region23: #{_lambda_.4} parent=0 // pred_check_branch
    %367 = sbr.rel (0) target = $region25
  $region24: #{_lambda_.4} parent=0 // pred_region
    _
  $region25: #{_lambda_.4} parent=0 // pred_fallthru
    _
  // Predicated region
  $region26: #{_lambda_.4} parent=0 // pred_check
    _
  $region27: #{_lambda_.4} parent=0 // pred_check_branch
    %369 = sbr.rel (0) target = $region29
  $region28: #{_lambda_.4} parent=0 // pred_region
    _
  $region29: #{_lambda_.4} parent=0 // pred_fallthru
    _

</llo_original>
